<compile_context>
chip_gen: v7x
topology: tpu7x:2x2x1
jax: 0.10.0
libtpu: 0.0.40
codegen_flags: <defaults>
</compile_context>

<pallas_src>
import math

import jax
import jax.numpy as jnp
from jax.experimental import pallas as pl
from jax.experimental.pallas import tpu as pltpu

_HIDDEN = 512
_LANE = 128


def _cdiv(a, b):
    return -(-a // b)


def _round_up(n, m):
    return ((n + m - 1) // m) * m


def _leaky_relu(h, negative_slope=0.01):
    # For slope in (0,1): max(h, slope*h) == LeakyReLU(h). One vmul + one vmax.
    return jnp.maximum(h, negative_slope * h)


def dqn_kernel(x_ref,
               w1_ref, b1_ref,
               w2_ref, b2_ref,
               w3_ref, b3_ref,
               w7_ref, b7_ref,
               o_ref):
    # MXU matmuls on bf16 operands with f32 accumulation; bias + LeakyReLU
    # epilogue in f32 (portable to v5e), intermediates re-narrowed to bf16.
    h = jnp.dot(x_ref[...], w1_ref[...],
                preferred_element_type=jnp.float32) + b1_ref[...]
    h = _leaky_relu(h).astype(jnp.bfloat16)

    h = jnp.dot(h, w2_ref[...],
                preferred_element_type=jnp.float32) + b2_ref[...]
    h = _leaky_relu(h).astype(jnp.bfloat16)

    h = jnp.dot(h, w3_ref[...],
                preferred_element_type=jnp.float32) + b3_ref[...]
    h = _leaky_relu(h).astype(jnp.bfloat16)

    o_ref[...] = (jnp.dot(h, w7_ref[...],
                          preferred_element_type=jnp.float32)
                  + b7_ref[...]).astype(o_ref.dtype)


def _choose_tiling(B, tb):
    """Balanced batch tiles: minimal padding (< 8 rows/tile) and >= 2 grid
    steps when the batch is big enough to split (v7x megacore)."""
    n_tiles = _cdiv(B, tb)
    if B >= 16:
        n_tiles = max(n_tiles, 2)
    TB = _round_up(_cdiv(B, n_tiles), 8)
    B_pad = n_tiles * TB
    return TB, B_pad, n_tiles


def dqn_forward(x, params, action_len, *, tb=512):
    """x: (B, state_len) f32. params: bf16 (in,out) weights, f32 (1,out) biases
    with fc7 lane-padded to a multiple of 128. Returns (B, action_len) f32."""
    B, state_len = x.shape
    hidden = params["w1"].shape[1]
    n_pad = params["w7"].shape[1]

    TB, B_pad, n_tiles = _choose_tiling(B, tb)
    if B_pad != B:
        x = jnp.pad(x, ((0, B_pad - B), (0, 0)))
    # Cast once in the wrapper: halves x DMA and drops a per-step VPU convert.
    x = x.astype(jnp.bfloat16)

    batch_map = lambda i: (i, 0)     # x / out tiles advance with the grid
    resident_map = lambda i: (0, 0)  # weights fetched once, stay VMEM-resident

    in_specs = [
        pl.BlockSpec((TB, state_len), batch_map),
        pl.BlockSpec((state_len, hidden), resident_map),
        pl.BlockSpec((1, hidden), resident_map),
        pl.BlockSpec((hidden, hidden), resident_map),
        pl.BlockSpec((1, hidden), resident_map),
        pl.BlockSpec((hidden, hidden), resident_map),
        pl.BlockSpec((1, hidden), resident_map),
        pl.BlockSpec((hidden, n_pad), resident_map),
        pl.BlockSpec((1, n_pad), resident_map),
    ]
    out_spec = pl.BlockSpec((TB, n_pad), batch_map)

    out_padded = pl.pallas_call(
        dqn_kernel,
        out_shape=jax.ShapeDtypeStruct((B_pad, n_pad), jnp.float32),
        grid=(n_tiles,),
        in_specs=in_specs,
        out_specs=out_spec,
        compiler_params=pltpu.CompilerParams(
            dimension_semantics=("parallel",)),
    )(x,
      params["w1"], params["b1"],
      params["w2"], params["b2"],
      params["w3"], params["b3"],
      params["w7"], params["b7"])

    return out_padded[:B, :action_len]


def fanin_init(key, size, fanin_value):
    """Mimics fanin_init(size, init_w): uniform(-v, v), v = 1/sqrt(init_w)."""
    v = 1.0 / math.sqrt(fanin_value)
    return jax.random.uniform(key, size, dtype=jnp.float32, minval=-v, maxval=v)


def make_params(key, state_len, action_len, hidden=_HIDDEN, init_w=3000000000.0):
    keys = jax.random.split(key, 8)
    # torch stores Linear weight as (out, in); build that way, then transpose
    # to (in, out) so the kernel computes x @ W (== torch's x @ W.T + b).
    w1 = fanin_init(keys[0], (hidden, state_len), init_w).T
    b1 = fanin_init(keys[1], (hidden,), init_w).reshape(1, -1)
    w2 = fanin_init(keys[2], (hidden, hidden), init_w).T
    b2 = fanin_init(keys[3], (hidden,), init_w).reshape(1, -1)
    w3 = fanin_init(keys[4], (hidden, hidden), init_w).T
    b3 = fanin_init(keys[5], (hidden,), init_w).reshape(1, -1)
    w7 = fanin_init(keys[6], (action_len, hidden), init_w).T
    b7 = fanin_init(keys[7], (action_len,), init_w).reshape(1, -1)

    # Lane-pad fc7 so the final matmul drain / output store is lane-dense.
    n_pad = _round_up(action_len, _LANE)
    w7 = jnp.pad(w7, ((0, 0), (0, n_pad - action_len)))
    b7 = jnp.pad(b7, ((0, 0), (0, n_pad - action_len)))

    bf16 = jnp.bfloat16
    return {
        "w1": w1.astype(bf16), "b1": b1,
        "w2": w2.astype(bf16), "b2": b2,
        "w3": w3.astype(bf16), "b3": b3,
        "w7": w7.astype(bf16), "b7": b7,
    }


def dqn_reference(x, p, action_len):
    """Pure-JAX reference mirroring the kernel's bf16-operand / f32-accumulate
    math (bf16 rounding on x, weights, and layer-to-layer activations)."""
    def layer(h_bf16, w, b):
        return jnp.dot(h_bf16.astype(jnp.float32),
                       w.astype(jnp.float32)) + b

    h = x.astype(jnp.bfloat16)
    h = _leaky_relu(layer(h, p["w1"], p["b1"])).astype(jnp.bfloat16)
    h = _leaky_relu(layer(h, p["w2"], p["b2"])).astype(jnp.bfloat16)
    h = _leaky_relu(layer(h, p["w3"], p["b3"])).astype(jnp.bfloat16)
    out = layer(h, p["w7"], p["b7"])
    return out[:, :action_len]


if __name__ == "__main__":
    B = 8
    STATE_LEN = 16
    ACTION_LEN = 8

    key = jax.random.PRNGKey(0)
    kx, kp = jax.random.split(key)
    x = jax.random.normal(kx, (B, STATE_LEN), dtype=jnp.float32)
    params = make_params(kp, STATE_LEN, ACTION_LEN)

    fwd = jax.jit(dqn_forward, static_argnums=(2,))
    out = jax.block_until_ready(fwd(x, params, ACTION_LEN))

    ref = dqn_reference(x, params, ACTION_LEN)
    assert out.shape == (B, ACTION_LEN)
    # bf16 operands + tiny init scale (init_w=3e9) => use a pure relative check
    # against the bf16-mirroring f32 reference.
    rel_err = float(jnp.max(jnp.abs(out - ref)) /
                    (jnp.max(jnp.abs(ref)) + 1e-30))
    assert rel_err < 5e-2, rel_err

    print("KERNEL_OK")
</pallas_src>

<mosaic_0001>
module attributes {stable_mosaic.version = 11 : i64} {
  func.func @dqn_kernel(%arg0: i32, %arg1: memref<8x16xbf16, #tpu.memory_space<vmem>>, %arg2: memref<16x512xbf16, #tpu.memory_space<vmem>>, %arg3: memref<1x512xf32, #tpu.memory_space<vmem>>, %arg4: memref<512x512xbf16, #tpu.memory_space<vmem>>, %arg5: memref<1x512xf32, #tpu.memory_space<vmem>>, %arg6: memref<512x512xbf16, #tpu.memory_space<vmem>>, %arg7: memref<1x512xf32, #tpu.memory_space<vmem>>, %arg8: memref<512x128xbf16, #tpu.memory_space<vmem>>, %arg9: memref<1x128xf32, #tpu.memory_space<vmem>>, %arg10: memref<8x128xf32, #tpu.memory_space<vmem>>) attributes {dimension_semantics = [#tpu.dimension_semantics<parallel>], iteration_bounds = array<i64: 1>, scalar_prefetch = 0 : i64, scratch_operands = 0 : i64, tpu.core_type = #tpu.core_type<tc>, window_params = [{transform_indices = @transform_0, window_bounds = array<i64: 8, 16>}, {pipeline_mode = #tpu.pipeline_mode<synchronous>, transform_indices = @transform_1, window_bounds = array<i64: 16, 512>}, {pipeline_mode = #tpu.pipeline_mode<synchronous>, transform_indices = @transform_2, window_bounds = array<i64: 1, 512>}, {pipeline_mode = #tpu.pipeline_mode<synchronous>, transform_indices = @transform_3, window_bounds = array<i64: 512, 512>}, {pipeline_mode = #tpu.pipeline_mode<synchronous>, transform_indices = @transform_4, window_bounds = array<i64: 1, 512>}, {pipeline_mode = #tpu.pipeline_mode<synchronous>, transform_indices = @transform_5, window_bounds = array<i64: 512, 512>}, {pipeline_mode = #tpu.pipeline_mode<synchronous>, transform_indices = @transform_6, window_bounds = array<i64: 1, 512>}, {pipeline_mode = #tpu.pipeline_mode<synchronous>, transform_indices = @transform_7, window_bounds = array<i64: 512, 128>}, {pipeline_mode = #tpu.pipeline_mode<synchronous>, transform_indices = @transform_8, window_bounds = array<i64: 1, 128>}, {transform_indices = @transform_9, window_bounds = array<i64: 8, 128>}]} {
    %c0 = arith.constant 0 : index
    %c0_0 = arith.constant 0 : index
    %0 = vector.load %arg1[%c0, %c0_0] : memref<8x16xbf16, #tpu.memory_space<vmem>>, vector<8x16xbf16>
    %c0_1 = arith.constant 0 : index
    %c0_2 = arith.constant 0 : index
    %1 = vector.load %arg2[%c0_1, %c0_2] : memref<16x512xbf16, #tpu.memory_space<vmem>>, vector<16x512xbf16>
    %cst = arith.constant dense<0.000000e+00> : vector<8x512xf32>
    %2 = tpu.matmul %0, %1, %cst {dimension_numbers = #tpu.dot_dimension_numbers<[1], [0], [0], [1], [0, 0, 1, 1], [], []>} : vector<8x16xbf16>, vector<16x512xbf16>, vector<8x512xf32> -> vector<8x512xf32>
    %c0_3 = arith.constant 0 : index
    %c0_4 = arith.constant 0 : index
    %3 = vector.load %arg3[%c0_3, %c0_4] : memref<1x512xf32, #tpu.memory_space<vmem>>, vector<1x512xf32>
    %4 = vector.broadcast %3 : vector<1x512xf32> to vector<8x512xf32>
    %5 = arith.addf %2, %4 : vector<8x512xf32>
    %cst_5 = arith.constant 0.00999999977 : f32
    %6 = vector.broadcast %cst_5 : f32 to vector<8x512xf32>
    %7 = arith.mulf %6, %5 : vector<8x512xf32>
    %8 = arith.maximumf %5, %7 : vector<8x512xf32>
    %9 = arith.truncf %8 : vector<8x512xf32> to vector<8x512xbf16>
    %c0_6 = arith.constant 0 : index
    %c0_7 = arith.constant 0 : index
    %10 = vector.load %arg4[%c0_6, %c0_7] : memref<512x512xbf16, #tpu.memory_space<vmem>>, vector<512x512xbf16>
    %cst_8 = arith.constant dense<0.000000e+00> : vector<8x512xf32>
    %11 = tpu.matmul %9, %10, %cst_8 {dimension_numbers = #tpu.dot_dimension_numbers<[1], [0], [0], [1], [0, 0, 1, 1], [], []>} : vector<8x512xbf16>, vector<512x512xbf16>, vector<8x512xf32> -> vector<8x512xf32>
    %c0_9 = arith.constant 0 : index
    %c0_10 = arith.constant 0 : index
    %12 = vector.load %arg5[%c0_9, %c0_10] : memref<1x512xf32, #tpu.memory_space<vmem>>, vector<1x512xf32>
    %13 = vector.broadcast %12 : vector<1x512xf32> to vector<8x512xf32>
    %14 = arith.addf %11, %13 : vector<8x512xf32>
    %cst_11 = arith.constant 0.00999999977 : f32
    %15 = vector.broadcast %cst_11 : f32 to vector<8x512xf32>
    %16 = arith.mulf %15, %14 : vector<8x512xf32>
    %17 = arith.maximumf %14, %16 : vector<8x512xf32>
    %18 = arith.truncf %17 : vector<8x512xf32> to vector<8x512xbf16>
    %c0_12 = arith.constant 0 : index
    %c0_13 = arith.constant 0 : index
    %19 = vector.load %arg6[%c0_12, %c0_13] : memref<512x512xbf16, #tpu.memory_space<vmem>>, vector<512x512xbf16>
    %cst_14 = arith.constant dense<0.000000e+00> : vector<8x512xf32>
    %20 = tpu.matmul %18, %19, %cst_14 {dimension_numbers = #tpu.dot_dimension_numbers<[1], [0], [0], [1], [0, 0, 1, 1], [], []>} : vector<8x512xbf16>, vector<512x512xbf16>, vector<8x512xf32> -> vector<8x512xf32>
    %c0_15 = arith.constant 0 : index
    %c0_16 = arith.constant 0 : index
    %21 = vector.load %arg7[%c0_15, %c0_16] : memref<1x512xf32, #tpu.memory_space<vmem>>, vector<1x512xf32>
    %22 = vector.broadcast %21 : vector<1x512xf32> to vector<8x512xf32>
    %23 = arith.addf %20, %22 : vector<8x512xf32>
    %cst_17 = arith.constant 0.00999999977 : f32
    %24 = vector.broadcast %cst_17 : f32 to vector<8x512xf32>
    %25 = arith.mulf %24, %23 : vector<8x512xf32>
    %26 = arith.maximumf %23, %25 : vector<8x512xf32>
    %27 = arith.truncf %26 : vector<8x512xf32> to vector<8x512xbf16>
    %c0_18 = arith.constant 0 : index
    %c0_19 = arith.constant 0 : index
    %28 = vector.load %arg8[%c0_18, %c0_19] : memref<512x128xbf16, #tpu.memory_space<vmem>>, vector<512x128xbf16>
    %cst_20 = arith.constant dense<0.000000e+00> : vector<8x128xf32>
    %29 = tpu.matmul %27, %28, %cst_20 {dimension_numbers = #tpu.dot_dimension_numbers<[1], [0], [0], [1], [0, 0, 1, 1], [], []>} : vector<8x512xbf16>, vector<512x128xbf16>, vector<8x128xf32> -> vector<8x128xf32>
    %c0_21 = arith.constant 0 : index
    %c0_22 = arith.constant 0 : index
    %30 = vector.load %arg9[%c0_21, %c0_22] : memref<1x128xf32, #tpu.memory_space<vmem>>, vector<1x128xf32>
    %31 = vector.broadcast %30 : vector<1x128xf32> to vector<8x128xf32>
    %32 = arith.addf %29, %31 : vector<8x128xf32>
    %c0_23 = arith.constant 0 : index
    %c0_24 = arith.constant 0 : index
    %33 = vector.load %arg10[%c0_23, %c0_24] : memref<8x128xf32, #tpu.memory_space<vmem>>, vector<8x128xf32>
    tpu.vector_store %arg10[%c0_23, %c0_24], %32 {strides = array<i32>} : memref<8x128xf32, #tpu.memory_space<vmem>>, vector<8x128xf32>,
    return
  }
  func.func @transform_0(%arg0: i32) -> (i32, i32) {
    %c0_i32 = arith.constant 0 : i32
    %c0_i32_0 = arith.constant 0 : i32
    return %arg0, %c0_i32 : i32, i32
  }
  func.func @transform_1(%arg0: i32) -> (i32, i32) {
    %c0_i32 = arith.constant 0 : i32
    %c0_i32_0 = arith.constant 0 : i32
    %c0_i32_1 = arith.constant 0 : i32
    return %c0_i32, %c0_i32_0 : i32, i32
  }
  func.func @transform_2(%arg0: i32) -> (i32, i32) {
    %c0_i32 = arith.constant 0 : i32
    %c0_i32_0 = arith.constant 0 : i32
    %c0_i32_1 = arith.constant 0 : i32
    return %c0_i32, %c0_i32_0 : i32, i32
  }
  func.func @transform_3(%arg0: i32) -> (i32, i32) {
    %c0_i32 = arith.constant 0 : i32
    %c0_i32_0 = arith.constant 0 : i32
    %c0_i32_1 = arith.constant 0 : i32
    return %c0_i32, %c0_i32_0 : i32, i32
  }
  func.func @transform_4(%arg0: i32) -> (i32, i32) {
    %c0_i32 = arith.constant 0 : i32
    %c0_i32_0 = arith.constant 0 : i32
    %c0_i32_1 = arith.constant 0 : i32
    return %c0_i32, %c0_i32_0 : i32, i32
  }
  func.func @transform_5(%arg0: i32) -> (i32, i32) {
    %c0_i32 = arith.constant 0 : i32
    %c0_i32_0 = arith.constant 0 : i32
    %c0_i32_1 = arith.constant 0 : i32
    return %c0_i32, %c0_i32_0 : i32, i32
  }
  func.func @transform_6(%arg0: i32) -> (i32, i32) {
    %c0_i32 = arith.constant 0 : i32
    %c0_i32_0 = arith.constant 0 : i32
    %c0_i32_1 = arith.constant 0 : i32
    return %c0_i32, %c0_i32_0 : i32, i32
  }
  func.func @transform_7(%arg0: i32) -> (i32, i32) {
    %c0_i32 = arith.constant 0 : i32
    %c0_i32_0 = arith.constant 0 : i32
    %c0_i32_1 = arith.constant 0 : i32
    return %c0_i32, %c0_i32_0 : i32, i32
  }
  func.func @transform_8(%arg0: i32) -> (i32, i32) {
    %c0_i32 = arith.constant 0 : i32
    %c0_i32_0 = arith.constant 0 : i32
    %c0_i32_1 = arith.constant 0 : i32
    return %c0_i32, %c0_i32_0 : i32, i32
  }
  func.func @transform_9(%arg0: i32) -> (i32, i32) {
    %c0_i32 = arith.constant 0 : i32
    %c0_i32_0 = arith.constant 0 : i32
    return %arg0, %c0_i32 : i32, i32
  }
}

</mosaic_0001>

<llo_original>
// kernel: dqn_forward.1
$region0: #{dqn_forward.1}
  #allocation0 [shape = 'u32[]', space=smem, size = 0x4, offset = 0x4, fixed_abs, tag = 'smem constant byte address 0x4 - core index']
  #allocation1 [shape = 'u32[144,128]{1,0:T(1,128)}', space=vmem, size = 0x12000, scoped, tag = 'internal scratch']
  %s0 = inlined_call_operand.vmem [shape: bf16[8,16], index: 0, kind: input, shape index: {}]
  %s1 = inlined_call_operand.hbm [shape: bf16[16,512], index: 1, kind: input, shape index: {}]
  %s2 = inlined_call_operand.vmem [shape: f32[1,512], index: 2, kind: input, shape index: {}]
  %s3 = inlined_call_operand.hbm [shape: bf16[512,512], index: 3, kind: input, shape index: {}]
  %s4 = inlined_call_operand.vmem [shape: f32[1,512], index: 4, kind: input, shape index: {}]
  %s5 = inlined_call_operand.hbm [shape: bf16[512,512], index: 5, kind: input, shape index: {}]
  %s6 = inlined_call_operand.vmem [shape: f32[1,512], index: 6, kind: input, shape index: {}]
  %s7 = inlined_call_operand.hbm [shape: bf16[512,128], index: 7, kind: input, shape index: {}]
  %s8 = inlined_call_operand.vmem [shape: f32[1,128], index: 8, kind: input, shape index: {}]
  %s9 = inlined_call_operand.hbm [shape: f32[8,128], index: 9, kind: output, shape index: {}]
  %s10 = sld [smem:[#allocation0]]
  $region62: #{dqn_forward.1} parent=0
    _
  %s12 = ssub.s32 1, %s10
  %s13 = scalar_select 0, %s12, %s10
  $region1: #{dqn_forward.1} parent=0
    #allocation2 [shape = 'u8[16384]{0}', space=vmem, size = 0x4000, scoped, tag = 'input window, operand 1, single buffered']
    #allocation3 [shape = 's32[1]{0}', space=sflag, size = 0x4, scoped, tag = 'scoped memory for dqn_forward.1']
    #allocation4 [shape = 's32[1]{0}', space=sflag, size = 0x4, scoped, tag = 'scoped memory for dqn_forward.1']
    #allocation5 [shape = 'u8[524288]{0}', space=vmem, size = 0x80000, scoped, tag = 'input window, operand 3, single buffered']
    #allocation6 [shape = 's32[1]{0}', space=sflag, size = 0x4, scoped, tag = 'scoped memory for dqn_forward.1']
    #allocation7 [shape = 'u8[524288]{0}', space=vmem, size = 0x80000, scoped, tag = 'input window, operand 5, single buffered']
    #allocation8 [shape = 'u8[131072]{0}', space=vmem, size = 0x20000, scoped, tag = 'input window, operand 7, single buffered']
    #allocation9 [shape = 's32[1]{0}', space=sflag, size = 0x4, scoped, tag = 'scoped memory for dqn_forward.1']
    #allocation10 [shape = 'u8[4096]{0}', space=vmem, size = 0x1000, scoped, tag = 'output window, operand 0, single buffered']
    %14 = vsyncpa [#allocation3], 0
    %15 = vsyncpa [#allocation6], 0
    %16 = vsyncpa [#allocation9], 0
    %17 = vsyncpa [#allocation4], 0
    // Predicated region
    $region2: #{dqn_forward.1} parent=1 // pred_check
      _
    $region3: #{dqn_forward.1} parent=1 // pred_check_branch
      %19 = sbr.rel (0) target = $region5
    $region4: #{dqn_forward.1} parent=1 // pred_region
      _
    $region5: #{dqn_forward.1} parent=1 // pred_fallthru
      _
    // Predicated region
    $region6: #{dqn_forward.1} parent=1 // pred_check
      _
    $region7: #{dqn_forward.1} parent=1 // pred_check_branch
      %21 = sbr.rel (0) target = $region9
    $region8: #{dqn_forward.1} parent=1 // pred_region
      %s23 = ssub.s32 512, 512
      %24 = vsyncadd [#allocation3], %s23
      %s25 = sshll.u32 [#allocation2], 4
      %s26 = int_to_ptr.vmem [resolvable:$true] %s25
      %31 = dma.hbm_to_vmem [thread:$0]  %s1, 512, %s26, [#allocation3], 256, 256, 16
    $region9: #{dqn_forward.1} parent=1 // pred_fallthru
      _
    // Predicated region
    $region10: #{dqn_forward.1} parent=1 // pred_check
      _
    $region11: #{dqn_forward.1} parent=1 // pred_check_branch
      %33 = sbr.rel (0) target = $region13
    $region12: #{dqn_forward.1} parent=1 // pred_region
      _
    $region13: #{dqn_forward.1} parent=1 // pred_fallthru
      _
    // Predicated region
    $region14: #{dqn_forward.1} parent=1 // pred_check
      _
    $region15: #{dqn_forward.1} parent=1 // pred_check_branch
      %35 = sbr.rel (0) target = $region17
    $region16: #{dqn_forward.1} parent=1 // pred_region
      %s37 = ssub.s32 16384, 16384
      %38 = vsyncadd [#allocation6], %s37
      %s39 = sshll.u32 [#allocation5], 4
      %s40 = int_to_ptr.vmem [resolvable:$true] %s39
      %45 = dma.hbm_to_vmem [thread:$0]  %s3, 16384, %s40, [#allocation6], 256, 256, 16
    $region17: #{dqn_forward.1} parent=1 // pred_fallthru
      _
    // Predicated region
    $region18: #{dqn_forward.1} parent=1 // pred_check
      _
    $region19: #{dqn_forward.1} parent=1 // pred_check_branch
      %47 = sbr.rel (0) target = $region21
    $region20: #{dqn_forward.1} parent=1 // pred_region
      _
    $region21: #{dqn_forward.1} parent=1 // pred_fallthru
      _
    // Predicated region
    $region22: #{dqn_forward.1} parent=1 // pred_check
      _
    $region23: #{dqn_forward.1} parent=1 // pred_check_branch
      %49 = sbr.rel (0) target = $region25
    $region24: #{dqn_forward.1} parent=1 // pred_region
      %s51 = ssub.s32 16384, 16384
      %52 = vsyncadd [#allocation6], %s51
      %s53 = sshll.u32 [#allocation7], 4
      %s54 = int_to_ptr.vmem [resolvable:$true] %s53
      %59 = dma.hbm_to_vmem [thread:$0]  %s5, 16384, %s54, [#allocation6], 256, 256, 16
    $region25: #{dqn_forward.1} parent=1 // pred_fallthru
      _
    // Predicated region
    $region26: #{dqn_forward.1} parent=1 // pred_check
      _
    $region27: #{dqn_forward.1} parent=1 // pred_check_branch
      %61 = sbr.rel (0) target = $region29
    $region28: #{dqn_forward.1} parent=1 // pred_region
      _
    $region29: #{dqn_forward.1} parent=1 // pred_fallthru
      _
    // Predicated region
    $region30: #{dqn_forward.1} parent=1 // pred_check
      _
    $region31: #{dqn_forward.1} parent=1 // pred_check_branch
      %63 = sbr.rel (0) target = $region33
    $region32: #{dqn_forward.1} parent=1 // pred_region
      %s65 = ssub.s32 4096, 4096
      %66 = vsyncadd [#allocation9], %s65
      %s67 = sshll.u32 [#allocation8], 4
      %s68 = int_to_ptr.vmem [resolvable:$true] %s67
      %73 = dma.hbm_to_vmem [thread:$0]  %s7, 4096, %s68, [#allocation9], 64, 64, 4
    $region33: #{dqn_forward.1} parent=1 // pred_fallthru
      _
    // Predicated region
    $region34: #{dqn_forward.1} parent=1 // pred_check
      _
    $region35: #{dqn_forward.1} parent=1 // pred_check_branch
      %75 = sbr.rel (0) target = $region37
    $region36: #{dqn_forward.1} parent=1 // pred_region
      _
    $region37: #{dqn_forward.1} parent=1 // pred_fallthru
      _
    // Predicated region
    $region38: #{dqn_forward.1} parent=1 // pred_check
      _
    $region39: #{dqn_forward.1} parent=1 // pred_check_branch
      %77 = sbr.rel (0) target = $region41
    $region40: #{dqn_forward.1} parent=1 // pred_region
      %78 = dma.done [#allocation3], 512
    $region41: #{dqn_forward.1} parent=1 // pred_fallthru
      _
    // Predicated region
    $region42: #{dqn_forward.1} parent=1 // pred_check
      _
    $region43: #{dqn_forward.1} parent=1 // pred_check_branch
      %80 = sbr.rel (0) target = $region45
    $region44: #{dqn_forward.1} parent=1 // pred_region
      %81 = dma.done [#allocation6], 16384
    $region45: #{dqn_forward.1} parent=1 // pred_fallthru
      _
    // Predicated region
    $region46: #{dqn_forward.1} parent=1 // pred_check
      _
    $region47: #{dqn_forward.1} parent=1 // pred_check_branch
      %83 = sbr.rel (0) target = $region49
    $region48: #{dqn_forward.1} parent=1 // pred_region
      %84 = dma.done [#allocation6], 16384
    $region49: #{dqn_forward.1} parent=1 // pred_fallthru
      _
    // Predicated region
    $region50: #{dqn_forward.1} parent=1 // pred_check
      _
    $region51: #{dqn_forward.1} parent=1 // pred_check_branch
      %86 = sbr.rel (0) target = $region53
    $region52: #{dqn_forward.1} parent=1 // pred_region
      %87 = dma.done [#allocation9], 4096
    $region53: #{dqn_forward.1} parent=1 // pred_fallthru
      _
    %v89 = vld [vmem:[%s0] sm:$0xf]
    %v90 = vld [vmem:[#allocation2] sm:$0xff]
    %v91 = vld [vmem:[#allocation2 + $0x8] sm:$0xff]
    %v92 = vld [vmem:[#allocation2 + $0x10] sm:$0xff]
    %v93 = vld [vmem:[#allocation2 + $0x18] sm:$0xff]
    %v94 = vld [vmem:[%s2] sm:$0xf]
    %v96 = vlaneseq
    %v97 = vshrl.u32 %v96, 7
    %v98 = vsub.s32 0, %v97
    %v99 = vrot.slane %v94, %v98
    %v100 = vlaneseq
    %v101 = vshrl.u32 %v100, 7
    %v102 = vsub.s32 1, %v101
    %v103 = vrot.slane %v94, %v102
    %v104 = vlaneseq
    %v105 = vshrl.u32 %v104, 7
    %v106 = vsub.s32 2, %v105
    %v107 = vrot.slane %v94, %v106
    %v108 = vlaneseq
    %v109 = vshrl.u32 %v108, 7
    %v110 = vsub.s32 3, %v109
    %v111 = vrot.slane %v94, %v110
    %v120 = vunpack.c.l.b16 %v90
    %v121 = vunpack.c.h.b16 %v90
    %v122 = vunpack.c.l.b16 %v91
    %v123 = vunpack.c.h.b16 %v91
    %v124 = vunpack.c.l.b16 %v92
    %v125 = vunpack.c.h.b16 %v92
    %v126 = vunpack.c.l.b16 %v93
    %v127 = vunpack.c.h.b16 %v93
    %v128 = vpack.c.b16 %v124, %v120
    %v129 = vpack.c.b16 %v125, %v121
    %v130 = vpack.c.b16 %v126, %v122
    %v131 = vpack.c.b16 %v127, %v123
    %vm136 = vcmask 130048
    %v138 = vsel %vm136, %v89, 0
    %140 = vmatprep.subr.bf16.mxu0 %v129
    %141 = vmatpush1.bf16.msra.mxu0 %v128
    %142 = vmatprep.subr.bf16.mxu0 0
    %143 = vmatpush1.bf16.msra.mxu0 0
    %144 = vmatprep.subr.bf16.mxu0 0
    %145 = vmatpush1.bf16.msra.mxu0 0
    %146 = vmatprep.subr.bf16.mxu0 0
    %147 = vmatpush1.bf16.msra.mxu0 0
    %148 = vmatprep.subr.bf16.mxu0 0
    %149 = vmatpush1.bf16.msra.mxu0 0
    %150 = vmatprep.subr.bf16.mxu0 0
    %151 = vmatpush1.bf16.msra.mxu0 0
    %152 = vmatprep.subr.bf16.mxu0 0
    %153 = vmatpush1.bf16.msra.mxu0 0
    %154 = vmatprep.subr.bf16.mxu0 0
    %155 = vmatpush1.bf16.msra.mxu0 0
    %156 = vmatprep.subr.bf16.mxu0 0
    %157 = vmatpush1.bf16.msra.mxu0 0
    %158 = vmatprep.subr.bf16.mxu0 0
    %159 = vmatpush1.bf16.msra.mxu0 0
    %160 = vmatprep.subr.bf16.mxu0 0
    %161 = vmatpush1.bf16.msra.mxu0 0
    %162 = vmatprep.subr.bf16.mxu0 0
    %163 = vmatpush1.bf16.msra.mxu0 0
    %164 = vmatprep.subr.bf16.mxu0 0
    %165 = vmatpush1.bf16.msra.mxu0 0
    %166 = vmatprep.subr.bf16.mxu0 0
    %167 = vmatpush1.bf16.msra.mxu0 0
    %168 = vmatprep.subr.bf16.mxu0 0
    %169 = vmatpush1.bf16.msra.mxu0 0
    %170 = vmatprep.subr.bf16.mxu0 0
    %171 = vmatpush1.bf16.msra.mxu0 0
    %172 = vmatprep.mubr.bf16.mxu0 0
    %173 = vmatmul.mubr.bf16.gmra.mrb[0].mxu0 %v138
    %v174 = vpop.f32.mrb[0].mxu0
    %v175 = vadd.f32 %v99, %v174
    %v176 = vpop.f32.mrb[0].mxu0
    %v177 = vadd.f32 %v103, %v176
    %v178 = vpop.f32.mrb[0].mxu0
    %v179 = vpop.f32.mrb[0].mxu0
    %180 = vdwg.mxu0
    %181 = vmatprep.subr.bf16.mxu0 %v131
    %182 = vmatpush1.bf16.msra.mxu0 %v130
    %183 = vmatprep.subr.bf16.mxu0 0
    %184 = vmatpush1.bf16.msra.mxu0 0
    %185 = vmatprep.subr.bf16.mxu0 0
    %186 = vmatpush1.bf16.msra.mxu0 0
    %187 = vmatprep.subr.bf16.mxu0 0
    %188 = vmatpush1.bf16.msra.mxu0 0
    %189 = vmatprep.subr.bf16.mxu0 0
    %190 = vmatpush1.bf16.msra.mxu0 0
    %191 = vmatprep.subr.bf16.mxu0 0
    %192 = vmatpush1.bf16.msra.mxu0 0
    %193 = vmatprep.subr.bf16.mxu0 0
    %194 = vmatpush1.bf16.msra.mxu0 0
    %195 = vmatprep.subr.bf16.mxu0 0
    %196 = vmatpush1.bf16.msra.mxu0 0
    %197 = vmatprep.subr.bf16.mxu0 0
    %198 = vmatpush1.bf16.msra.mxu0 0
    %199 = vmatprep.subr.bf16.mxu0 0
    %200 = vmatpush1.bf16.msra.mxu0 0
    %201 = vmatprep.subr.bf16.mxu0 0
    %202 = vmatpush1.bf16.msra.mxu0 0
    %203 = vmatprep.subr.bf16.mxu0 0
    %204 = vmatpush1.bf16.msra.mxu0 0
    %205 = vmatprep.subr.bf16.mxu0 0
    %206 = vmatpush1.bf16.msra.mxu0 0
    %207 = vmatprep.subr.bf16.mxu0 0
    %208 = vmatpush1.bf16.msra.mxu0 0
    %209 = vmatprep.subr.bf16.mxu0 0
    %210 = vmatpush1.bf16.msra.mxu0 0
    %211 = vmatprep.subr.bf16.mxu0 0
    %212 = vmatpush1.bf16.msra.mxu0 0
    %213 = vmatprep.mubr.bf16.mxu0 0
    %214 = vmatmul.mubr.bf16.gmra.mrb[0].mxu0 %v138
    %v215 = vpop.f32.mrb[0].mxu0
    %v216 = vadd.f32 %v107, %v215
    %v217 = vpop.f32.mrb[0].mxu0
    %v218 = vadd.f32 %v111, %v217
    %v219 = vpop.f32.mrb[0].mxu0
    %v220 = vpop.f32.mrb[0].mxu0
    %221 = vdwg.mxu0
    %v222 = vmul.f32 %v175, 0.01
    %v223 = vmul.f32 %v177, 0.01
    %v224 = vmul.f32 %v216, 0.01
    %v225 = vmul.f32 %v218, 0.01
    %v226 = vmax.f32 %v175, %v222
    %v227 = vmax.f32 %v177, %v223
    %v228 = vmax.f32 %v216, %v224
    %v229 = vmax.f32 %v218, %v225
    %v230 = vpack.c.bf16 %v226, %v226
    %v231 = vpack.c.bf16 %v227, %v227
    %v232 = vpack.c.bf16 %v228, %v228
    %v233 = vpack.c.bf16 %v229, %v229
    %v234 = vld [vmem:[#allocation5] sm:$0xff]
    %v235 = vld [vmem:[#allocation5 + $0x8] sm:$0xff]
    %v236 = vld [vmem:[#allocation5 + $0x10] sm:$0xff]
    %v237 = vld [vmem:[#allocation5 + $0x18] sm:$0xff]
    %v238 = vld [vmem:[#allocation5 + $0x20] sm:$0xff]
    %v239 = vld [vmem:[#allocation5 + $0x28] sm:$0xff]
    %v240 = vld [vmem:[#allocation5 + $0x30] sm:$0xff]
    %v241 = vld [vmem:[#allocation5 + $0x38] sm:$0xff]
    %v242 = vld [vmem:[#allocation5 + $0x40] sm:$0xff]
    %v243 = vld [vmem:[#allocation5 + $0x48] sm:$0xff]
    %v244 = vld [vmem:[#allocation5 + $0x50] sm:$0xff]
    %v245 = vld [vmem:[#allocation5 + $0x58] sm:$0xff]
    %v246 = vld [vmem:[#allocation5 + $0x60] sm:$0xff]
    %v247 = vld [vmem:[#allocation5 + $0x68] sm:$0xff]
    %v248 = vld [vmem:[#allocation5 + $0x70] sm:$0xff]
    %v249 = vld [vmem:[#allocation5 + $0x78] sm:$0xff]
    %v250 = vld [vmem:[#allocation5 + $0x80] sm:$0xff]
    %v251 = vld [vmem:[#allocation5 + $0x88] sm:$0xff]
    %v252 = vld [vmem:[#allocation5 + $0x90] sm:$0xff]
    %v253 = vld [vmem:[#allocation5 + $0x98] sm:$0xff]
    %v254 = vld [vmem:[#allocation5 + $0xa0] sm:$0xff]
    %v255 = vld [vmem:[#allocation5 + $0xa8] sm:$0xff]
    %v256 = vld [vmem:[#allocation5 + $0xb0] sm:$0xff]
    %v257 = vld [vmem:[#allocation5 + $0xb8] sm:$0xff]
    %v258 = vld [vmem:[#allocation5 + $0xc0] sm:$0xff]
    %v259 = vld [vmem:[#allocation5 + $0xc8] sm:$0xff]
    %v260 = vld [vmem:[#allocation5 + $0xd0] sm:$0xff]
    %v261 = vld [vmem:[#allocation5 + $0xd8] sm:$0xff]
    %v262 = vld [vmem:[#allocation5 + $0xe0] sm:$0xff]
    %v263 = vld [vmem:[#allocation5 + $0xe8] sm:$0xff]
    %v264 = vld [vmem:[#allocation5 + $0xf0] sm:$0xff]
    %v265 = vld [vmem:[#allocation5 + $0xf8] sm:$0xff]
    %v266 = vld [vmem:[#allocation5 + $0x100] sm:$0xff]
    %v267 = vld [vmem:[#allocation5 + $0x108] sm:$0xff]
    %v268 = vld [vmem:[#allocation5 + $0x110] sm:$0xff]
    %v269 = vld [vmem:[#allocation5 + $0x118] sm:$0xff]
    %v270 = vld [vmem:[#allocation5 + $0x120] sm:$0xff]
    %v271 = vld [vmem:[#allocation5 + $0x128] sm:$0xff]
    %v272 = vld [vmem:[#allocation5 + $0x130] sm:$0xff]
    %v273 = vld [vmem:[#allocation5 + $0x138] sm:$0xff]
    %v274 = vld [vmem:[#allocation5 + $0x140] sm:$0xff]
    %v275 = vld [vmem:[#allocation5 + $0x148] sm:$0xff]
    %v276 = vld [vmem:[#allocation5 + $0x150] sm:$0xff]
    %v277 = vld [vmem:[#allocation5 + $0x158] sm:$0xff]
    %v278 = vld [vmem:[#allocation5 + $0x160] sm:$0xff]
    %v279 = vld [vmem:[#allocation5 + $0x168] sm:$0xff]
    %v280 = vld [vmem:[#allocation5 + $0x170] sm:$0xff]
    %v281 = vld [vmem:[#allocation5 + $0x178] sm:$0xff]
    %v282 = vld [vmem:[#allocation5 + $0x180] sm:$0xff]
    %v283 = vld [vmem:[#allocation5 + $0x188] sm:$0xff]
    %v284 = vld [vmem:[#allocation5 + $0x190] sm:$0xff]
    %v285 = vld [vmem:[#allocation5 + $0x198] sm:$0xff]
    %v286 = vld [vmem:[#allocation5 + $0x1a0] sm:$0xff]
    %v287 = vld [vmem:[#allocation5 + $0x1a8] sm:$0xff]
    %v288 = vld [vmem:[#allocation5 + $0x1b0] sm:$0xff]
    %v289 = vld [vmem:[#allocation5 + $0x1b8] sm:$0xff]
    %v290 = vld [vmem:[#allocation5 + $0x1c0] sm:$0xff]
    %v291 = vld [vmem:[#allocation5 + $0x1c8] sm:$0xff]
    %v292 = vld [vmem:[#allocation5 + $0x1d0] sm:$0xff]
    %v293 = vld [vmem:[#allocation5 + $0x1d8] sm:$0xff]
    %v294 = vld [vmem:[#allocation5 + $0x1e0] sm:$0xff]
    %v295 = vld [vmem:[#allocation5 + $0x1e8] sm:$0xff]
    %v296 = vld [vmem:[#allocation5 + $0x1f0] sm:$0xff]
    %v297 = vld [vmem:[#allocation5 + $0x1f8] sm:$0xff]
    %v298 = vld [vmem:[#allocation5 + $0x200] sm:$0xff]
    %v299 = vld [vmem:[#allocation5 + $0x208] sm:$0xff]
    %v300 = vld [vmem:[#allocation5 + $0x210] sm:$0xff]
    %v301 = vld [vmem:[#allocation5 + $0x218] sm:$0xff]
    %v302 = vld [vmem:[#allocation5 + $0x220] sm:$0xff]
    %v303 = vld [vmem:[#allocation5 + $0x228] sm:$0xff]
    %v304 = vld [vmem:[#allocation5 + $0x230] sm:$0xff]
    %v305 = vld [vmem:[#allocation5 + $0x238] sm:$0xff]
    %v306 = vld [vmem:[#allocation5 + $0x240] sm:$0xff]
    %v307 = vld [vmem:[#allocation5 + $0x248] sm:$0xff]
    %v308 = vld [vmem:[#allocation5 + $0x250] sm:$0xff]
    %v309 = vld [vmem:[#allocation5 + $0x258] sm:$0xff]
    %v310 = vld [vmem:[#allocation5 + $0x260] sm:$0xff]
    %v311 = vld [vmem:[#allocation5 + $0x268] sm:$0xff]
    %v312 = vld [vmem:[#allocation5 + $0x270] sm:$0xff]
    %v313 = vld [vmem:[#allocation5 + $0x278] sm:$0xff]
    %v314 = vld [vmem:[#allocation5 + $0x280] sm:$0xff]
    %v315 = vld [vmem:[#allocation5 + $0x288] sm:$0xff]
    %v316 = vld [vmem:[#allocation5 + $0x290] sm:$0xff]
    %v317 = vld [vmem:[#allocation5 + $0x298] sm:$0xff]
    %v318 = vld [vmem:[#allocation5 + $0x2a0] sm:$0xff]
    %v319 = vld [vmem:[#allocation5 + $0x2a8] sm:$0xff]
    %v320 = vld [vmem:[#allocation5 + $0x2b0] sm:$0xff]
    %v321 = vld [vmem:[#allocation5 + $0x2b8] sm:$0xff]
    %v322 = vld [vmem:[#allocation5 + $0x2c0] sm:$0xff]
    %v323 = vld [vmem:[#allocation5 + $0x2c8] sm:$0xff]
    %v324 = vld [vmem:[#allocation5 + $0x2d0] sm:$0xff]
    %v325 = vld [vmem:[#allocation5 + $0x2d8] sm:$0xff]
    %v326 = vld [vmem:[#allocation5 + $0x2e0] sm:$0xff]
    %v327 = vld [vmem:[#allocation5 + $0x2e8] sm:$0xff]
    %v328 = vld [vmem:[#allocation5 + $0x2f0] sm:$0xff]
    %v329 = vld [vmem:[#allocation5 + $0x2f8] sm:$0xff]
    %v330 = vld [vmem:[#allocation5 + $0x300] sm:$0xff]
    %v331 = vld [vmem:[#allocation5 + $0x308] sm:$0xff]
    %v332 = vld [vmem:[#allocation5 + $0x310] sm:$0xff]
    %v333 = vld [vmem:[#allocation5 + $0x318] sm:$0xff]
    %v334 = vld [vmem:[#allocation5 + $0x320] sm:$0xff]
    %v335 = vld [vmem:[#allocation5 + $0x328] sm:$0xff]
    %v336 = vld [vmem:[#allocation5 + $0x330] sm:$0xff]
    %v337 = vld [vmem:[#allocation5 + $0x338] sm:$0xff]
    %v338 = vld [vmem:[#allocation5 + $0x340] sm:$0xff]
    %v339 = vld [vmem:[#allocation5 + $0x348] sm:$0xff]
    %v340 = vld [vmem:[#allocation5 + $0x350] sm:$0xff]
    %v341 = vld [vmem:[#allocation5 + $0x358] sm:$0xff]
    %v342 = vld [vmem:[#allocation5 + $0x360] sm:$0xff]
    %v343 = vld [vmem:[#allocation5 + $0x368] sm:$0xff]
    %v344 = vld [vmem:[#allocation5 + $0x370] sm:$0xff]
    %v345 = vld [vmem:[#allocation5 + $0x378] sm:$0xff]
    %v346 = vld [vmem:[#allocation5 + $0x380] sm:$0xff]
    %v347 = vld [vmem:[#allocation5 + $0x388] sm:$0xff]
    %v348 = vld [vmem:[#allocation5 + $0x390] sm:$0xff]
    %v349 = vld [vmem:[#allocation5 + $0x398] sm:$0xff]
    %v350 = vld [vmem:[#allocation5 + $0x3a0] sm:$0xff]
    %v351 = vld [vmem:[#allocation5 + $0x3a8] sm:$0xff]
    %v352 = vld [vmem:[#allocation5 + $0x3b0] sm:$0xff]
    %v353 = vld [vmem:[#allocation5 + $0x3b8] sm:$0xff]
    %v354 = vld [vmem:[#allocation5 + $0x3c0] sm:$0xff]
    %v355 = vld [vmem:[#allocation5 + $0x3c8] sm:$0xff]
    %v356 = vld [vmem:[#allocation5 + $0x3d0] sm:$0xff]
    %v357 = vld [vmem:[#allocation5 + $0x3d8] sm:$0xff]
    %v358 = vld [vmem:[#allocation5 + $0x3e0] sm:$0xff]
    %v359 = vld [vmem:[#allocation5 + $0x3e8] sm:$0xff]
    %v360 = vld [vmem:[#allocation5 + $0x3f0] sm:$0xff]
    %v361 = vld [vmem:[#allocation5 + $0x3f8] sm:$0xff]
    %v362 = vld [vmem:[%s4] sm:$0xf]
    %v364 = vlaneseq
    %v365 = vshrl.u32 %v364, 7
    %v366 = vsub.s32 0, %v365
    %v367 = vrot.slane %v362, %v366
    %v368 = vlaneseq
    %v369 = vshrl.u32 %v368, 7
    %v370 = vsub.s32 1, %v369
    %v371 = vrot.slane %v362, %v370
    %v372 = vlaneseq
    %v373 = vshrl.u32 %v372, 7
    %v374 = vsub.s32 2, %v373
    %v375 = vrot.slane %v362, %v374
    %v376 = vlaneseq
    %v377 = vshrl.u32 %v376, 7
    %v378 = vsub.s32 3, %v377
    %v379 = vrot.slane %v362, %v378
    %v512 = vunpack.c.l.b16 %v234
    %v513 = vunpack.c.h.b16 %v234
    %v514 = vunpack.c.l.b16 %v235
    %v515 = vunpack.c.h.b16 %v235
    %v516 = vunpack.c.l.b16 %v236
    %v517 = vunpack.c.h.b16 %v236
    %v518 = vunpack.c.l.b16 %v237
    %v519 = vunpack.c.h.b16 %v237
    %v520 = vunpack.c.l.b16 %v238
    %v521 = vunpack.c.h.b16 %v238
    %v522 = vunpack.c.l.b16 %v239
    %v523 = vunpack.c.h.b16 %v239
    %v524 = vunpack.c.l.b16 %v240
    %v525 = vunpack.c.h.b16 %v240
    %v526 = vunpack.c.l.b16 %v241
    %v527 = vunpack.c.h.b16 %v241
    %v528 = vunpack.c.l.b16 %v242
    %v529 = vunpack.c.h.b16 %v242
    %v530 = vunpack.c.l.b16 %v243
    %v531 = vunpack.c.h.b16 %v243
    %v532 = vunpack.c.l.b16 %v244
    %v533 = vunpack.c.h.b16 %v244
    %v534 = vunpack.c.l.b16 %v245
    %v535 = vunpack.c.h.b16 %v245
    %v536 = vunpack.c.l.b16 %v246
    %v537 = vunpack.c.h.b16 %v246
    %v538 = vunpack.c.l.b16 %v247
    %v539 = vunpack.c.h.b16 %v247
    %v540 = vunpack.c.l.b16 %v248
    %v541 = vunpack.c.h.b16 %v248
    %v542 = vunpack.c.l.b16 %v249
    %v543 = vunpack.c.h.b16 %v249
    %v544 = vunpack.c.l.b16 %v250
    %v545 = vunpack.c.h.b16 %v250
    %v546 = vunpack.c.l.b16 %v251
    %v547 = vunpack.c.h.b16 %v251
    %v548 = vunpack.c.l.b16 %v252
    %v549 = vunpack.c.h.b16 %v252
    %v550 = vunpack.c.l.b16 %v253
    %v551 = vunpack.c.h.b16 %v253
    %v552 = vunpack.c.l.b16 %v254
    %v553 = vunpack.c.h.b16 %v254
    %v554 = vunpack.c.l.b16 %v255
    %v555 = vunpack.c.h.b16 %v255
    %v556 = vunpack.c.l.b16 %v256
    %v557 = vunpack.c.h.b16 %v256
    %v558 = vunpack.c.l.b16 %v257
    %v559 = vunpack.c.h.b16 %v257
    %v560 = vunpack.c.l.b16 %v258
    %v561 = vunpack.c.h.b16 %v258
    %v562 = vunpack.c.l.b16 %v259
    %v563 = vunpack.c.h.b16 %v259
    %v564 = vunpack.c.l.b16 %v260
    %v565 = vunpack.c.h.b16 %v260
    %v566 = vunpack.c.l.b16 %v261
    %v567 = vunpack.c.h.b16 %v261
    %v568 = vunpack.c.l.b16 %v262
    %v569 = vunpack.c.h.b16 %v262
    %v570 = vunpack.c.l.b16 %v263
    %v571 = vunpack.c.h.b16 %v263
    %v572 = vunpack.c.l.b16 %v264
    %v573 = vunpack.c.h.b16 %v264
    %v574 = vunpack.c.l.b16 %v265
    %v575 = vunpack.c.h.b16 %v265
    %v576 = vunpack.c.l.b16 %v266
    %v577 = vunpack.c.h.b16 %v266
    %v578 = vunpack.c.l.b16 %v267
    %v579 = vunpack.c.h.b16 %v267
    %v580 = vunpack.c.l.b16 %v268
    %v581 = vunpack.c.h.b16 %v268
    %v582 = vunpack.c.l.b16 %v269
    %v583 = vunpack.c.h.b16 %v269
    %v584 = vunpack.c.l.b16 %v270
    %v585 = vunpack.c.h.b16 %v270
    %v586 = vunpack.c.l.b16 %v271
    %v587 = vunpack.c.h.b16 %v271
    %v588 = vunpack.c.l.b16 %v272
    %v589 = vunpack.c.h.b16 %v272
    %v590 = vunpack.c.l.b16 %v273
    %v591 = vunpack.c.h.b16 %v273
    %v592 = vunpack.c.l.b16 %v274
    %v593 = vunpack.c.h.b16 %v274
    %v594 = vunpack.c.l.b16 %v275
    %v595 = vunpack.c.h.b16 %v275
    %v596 = vunpack.c.l.b16 %v276
    %v597 = vunpack.c.h.b16 %v276
    %v598 = vunpack.c.l.b16 %v277
    %v599 = vunpack.c.h.b16 %v277
    %v600 = vunpack.c.l.b16 %v278
    %v601 = vunpack.c.h.b16 %v278
    %v602 = vunpack.c.l.b16 %v279
    %v603 = vunpack.c.h.b16 %v279
    %v604 = vunpack.c.l.b16 %v280
    %v605 = vunpack.c.h.b16 %v280
    %v606 = vunpack.c.l.b16 %v281
    %v607 = vunpack.c.h.b16 %v281
    %v608 = vunpack.c.l.b16 %v282
    %v609 = vunpack.c.h.b16 %v282
    %v610 = vunpack.c.l.b16 %v283
    %v611 = vunpack.c.h.b16 %v283
    %v612 = vunpack.c.l.b16 %v284
    %v613 = vunpack.c.h.b16 %v284
    %v614 = vunpack.c.l.b16 %v285
    %v615 = vunpack.c.h.b16 %v285
    %v616 = vunpack.c.l.b16 %v286
    %v617 = vunpack.c.h.b16 %v286
    %v618 = vunpack.c.l.b16 %v287
    %v619 = vunpack.c.h.b16 %v287
    %v620 = vunpack.c.l.b16 %v288
    %v621 = vunpack.c.h.b16 %v288
    %v622 = vunpack.c.l.b16 %v289
    %v623 = vunpack.c.h.b16 %v289
    %v624 = vunpack.c.l.b16 %v290
    %v625 = vunpack.c.h.b16 %v290
    %v626 = vunpack.c.l.b16 %v291
    %v627 = vunpack.c.h.b16 %v291
    %v628 = vunpack.c.l.b16 %v292
    %v629 = vunpack.c.h.b16 %v292
    %v630 = vunpack.c.l.b16 %v293
    %v631 = vunpack.c.h.b16 %v293
    %v632 = vunpack.c.l.b16 %v294
    %v633 = vunpack.c.h.b16 %v294
    %v634 = vunpack.c.l.b16 %v295
    %v635 = vunpack.c.h.b16 %v295
    %v636 = vunpack.c.l.b16 %v296
    %v637 = vunpack.c.h.b16 %v296
    %v638 = vunpack.c.l.b16 %v297
    %v639 = vunpack.c.h.b16 %v297
    %v640 = vunpack.c.l.b16 %v298
    %v641 = vunpack.c.h.b16 %v298
    %v642 = vunpack.c.l.b16 %v299
    %v643 = vunpack.c.h.b16 %v299
    %v644 = vunpack.c.l.b16 %v300
    %v645 = vunpack.c.h.b16 %v300
    %v646 = vunpack.c.l.b16 %v301
    %v647 = vunpack.c.h.b16 %v301
    %v648 = vunpack.c.l.b16 %v302
    %v649 = vunpack.c.h.b16 %v302
    %v650 = vunpack.c.l.b16 %v303
    %v651 = vunpack.c.h.b16 %v303
    %v652 = vunpack.c.l.b16 %v304
    %v653 = vunpack.c.h.b16 %v304
    %v654 = vunpack.c.l.b16 %v305
    %v655 = vunpack.c.h.b16 %v305
    %v656 = vunpack.c.l.b16 %v306
    %v657 = vunpack.c.h.b16 %v306
    %v658 = vunpack.c.l.b16 %v307
    %v659 = vunpack.c.h.b16 %v307
    %v660 = vunpack.c.l.b16 %v308
    %v661 = vunpack.c.h.b16 %v308
    %v662 = vunpack.c.l.b16 %v309
    %v663 = vunpack.c.h.b16 %v309
    %v664 = vunpack.c.l.b16 %v310
    %v665 = vunpack.c.h.b16 %v310
    %v666 = vunpack.c.l.b16 %v311
    %v667 = vunpack.c.h.b16 %v311
    %v668 = vunpack.c.l.b16 %v312
    %v669 = vunpack.c.h.b16 %v312
    %v670 = vunpack.c.l.b16 %v313
    %v671 = vunpack.c.h.b16 %v313
    %v672 = vunpack.c.l.b16 %v314
    %v673 = vunpack.c.h.b16 %v314
    %v674 = vunpack.c.l.b16 %v315
    %v675 = vunpack.c.h.b16 %v315
    %v676 = vunpack.c.l.b16 %v316
    %v677 = vunpack.c.h.b16 %v316
    %v678 = vunpack.c.l.b16 %v317
    %v679 = vunpack.c.h.b16 %v317
    %v680 = vunpack.c.l.b16 %v318
    %v681 = vunpack.c.h.b16 %v318
    %v682 = vunpack.c.l.b16 %v319
    %v683 = vunpack.c.h.b16 %v319
    %v684 = vunpack.c.l.b16 %v320
    %v685 = vunpack.c.h.b16 %v320
    %v686 = vunpack.c.l.b16 %v321
    %v687 = vunpack.c.h.b16 %v321
    %v688 = vunpack.c.l.b16 %v322
    %v689 = vunpack.c.h.b16 %v322
    %v690 = vunpack.c.l.b16 %v323
    %v691 = vunpack.c.h.b16 %v323
    %v692 = vunpack.c.l.b16 %v324
    %v693 = vunpack.c.h.b16 %v324
    %v694 = vunpack.c.l.b16 %v325
    %v695 = vunpack.c.h.b16 %v325
    %v696 = vunpack.c.l.b16 %v326
    %v697 = vunpack.c.h.b16 %v326
    %v698 = vunpack.c.l.b16 %v327
    %v699 = vunpack.c.h.b16 %v327
    %v700 = vunpack.c.l.b16 %v328
    %v701 = vunpack.c.h.b16 %v328
    %v702 = vunpack.c.l.b16 %v329
    %v703 = vunpack.c.h.b16 %v329
    %v704 = vunpack.c.l.b16 %v330
    %v705 = vunpack.c.h.b16 %v330
    %v706 = vunpack.c.l.b16 %v331
    %v707 = vunpack.c.h.b16 %v331
    %v708 = vunpack.c.l.b16 %v332
    %v709 = vunpack.c.h.b16 %v332
    %v710 = vunpack.c.l.b16 %v333
    %v711 = vunpack.c.h.b16 %v333
    %v712 = vunpack.c.l.b16 %v334
    %v713 = vunpack.c.h.b16 %v334
    %v714 = vunpack.c.l.b16 %v335
    %v715 = vunpack.c.h.b16 %v335
    %v716 = vunpack.c.l.b16 %v336
    %v717 = vunpack.c.h.b16 %v336
    %v718 = vunpack.c.l.b16 %v337
    %v719 = vunpack.c.h.b16 %v337
    %v720 = vunpack.c.l.b16 %v338
    %v721 = vunpack.c.h.b16 %v338
    %v722 = vunpack.c.l.b16 %v339
    %v723 = vunpack.c.h.b16 %v339
    %v724 = vunpack.c.l.b16 %v340
    %v725 = vunpack.c.h.b16 %v340
    %v726 = vunpack.c.l.b16 %v341
    %v727 = vunpack.c.h.b16 %v341
    %v728 = vunpack.c.l.b16 %v342
    %v729 = vunpack.c.h.b16 %v342
    %v730 = vunpack.c.l.b16 %v343
    %v731 = vunpack.c.h.b16 %v343
    %v732 = vunpack.c.l.b16 %v344
    %v733 = vunpack.c.h.b16 %v344
    %v734 = vunpack.c.l.b16 %v345
    %v735 = vunpack.c.h.b16 %v345
    %v736 = vunpack.c.l.b16 %v346
    %v737 = vunpack.c.h.b16 %v346
    %v738 = vunpack.c.l.b16 %v347
    %v739 = vunpack.c.h.b16 %v347
    %v740 = vunpack.c.l.b16 %v348
    %v741 = vunpack.c.h.b16 %v348
    %v742 = vunpack.c.l.b16 %v349
    %v743 = vunpack.c.h.b16 %v349
    %v744 = vunpack.c.l.b16 %v350
    %v745 = vunpack.c.h.b16 %v350
    %v746 = vunpack.c.l.b16 %v351
    %v747 = vunpack.c.h.b16 %v351
    %v748 = vunpack.c.l.b16 %v352
    %v749 = vunpack.c.h.b16 %v352
    %v750 = vunpack.c.l.b16 %v353
    %v751 = vunpack.c.h.b16 %v353
    %v752 = vunpack.c.l.b16 %v354
    %v753 = vunpack.c.h.b16 %v354
    %v754 = vunpack.c.l.b16 %v355
    %v755 = vunpack.c.h.b16 %v355
    %v756 = vunpack.c.l.b16 %v356
    %v757 = vunpack.c.h.b16 %v356
    %v758 = vunpack.c.l.b16 %v357
    %v759 = vunpack.c.h.b16 %v357
    %v760 = vunpack.c.l.b16 %v358
    %v761 = vunpack.c.h.b16 %v358
    %v762 = vunpack.c.l.b16 %v359
    %v763 = vunpack.c.h.b16 %v359
    %v764 = vunpack.c.l.b16 %v360
    %v765 = vunpack.c.h.b16 %v360
    %v766 = vunpack.c.l.b16 %v361
    %v767 = vunpack.c.h.b16 %v361
    %v768 = vpack.c.b16 %v516, %v512
    %v769 = vpack.c.b16 %v517, %v513
    %v770 = vpack.c.b16 %v518, %v514
    %v771 = vpack.c.b16 %v519, %v515
    %v772 = vpack.c.b16 %v524, %v520
    %v773 = vpack.c.b16 %v525, %v521
    %v774 = vpack.c.b16 %v526, %v522
    %v775 = vpack.c.b16 %v527, %v523
    %v776 = vpack.c.b16 %v532, %v528
    %v777 = vpack.c.b16 %v533, %v529
    %v778 = vpack.c.b16 %v534, %v530
    %v779 = vpack.c.b16 %v535, %v531
    %v780 = vpack.c.b16 %v540, %v536
    %v781 = vpack.c.b16 %v541, %v537
    %v782 = vpack.c.b16 %v542, %v538
    %v783 = vpack.c.b16 %v543, %v539
    %v784 = vpack.c.b16 %v548, %v544
    %v785 = vpack.c.b16 %v549, %v545
    %v786 = vpack.c.b16 %v550, %v546
    %v787 = vpack.c.b16 %v551, %v547
    %v788 = vpack.c.b16 %v556, %v552
    %v789 = vpack.c.b16 %v557, %v553
    %v790 = vpack.c.b16 %v558, %v554
    %v791 = vpack.c.b16 %v559, %v555
    %v792 = vpack.c.b16 %v564, %v560
    %v793 = vpack.c.b16 %v565, %v561
    %v794 = vpack.c.b16 %v566, %v562
    %v795 = vpack.c.b16 %v567, %v563
    %v796 = vpack.c.b16 %v572, %v568
    %v797 = vpack.c.b16 %v573, %v569
    %v798 = vpack.c.b16 %v574, %v570
    %v799 = vpack.c.b16 %v575, %v571
    %v800 = vpack.c.b16 %v580, %v576
    %v801 = vpack.c.b16 %v581, %v577
    %v802 = vpack.c.b16 %v582, %v578
    %v803 = vpack.c.b16 %v583, %v579
    %v804 = vpack.c.b16 %v588, %v584
    %v805 = vpack.c.b16 %v589, %v585
    %v806 = vpack.c.b16 %v590, %v586
    %v807 = vpack.c.b16 %v591, %v587
    %v808 = vpack.c.b16 %v596, %v592
    %v809 = vpack.c.b16 %v597, %v593
    %v810 = vpack.c.b16 %v598, %v594
    %v811 = vpack.c.b16 %v599, %v595
    %v812 = vpack.c.b16 %v604, %v600
    %v813 = vpack.c.b16 %v605, %v601
    %v814 = vpack.c.b16 %v606, %v602
    %v815 = vpack.c.b16 %v607, %v603
    %v816 = vpack.c.b16 %v612, %v608
    %v817 = vpack.c.b16 %v613, %v609
    %v818 = vpack.c.b16 %v614, %v610
    %v819 = vpack.c.b16 %v615, %v611
    %v820 = vpack.c.b16 %v620, %v616
    %v821 = vpack.c.b16 %v621, %v617
    %v822 = vpack.c.b16 %v622, %v618
    %v823 = vpack.c.b16 %v623, %v619
    %v824 = vpack.c.b16 %v628, %v624
    %v825 = vpack.c.b16 %v629, %v625
    %v826 = vpack.c.b16 %v630, %v626
    %v827 = vpack.c.b16 %v631, %v627
    %v828 = vpack.c.b16 %v636, %v632
    %v829 = vpack.c.b16 %v637, %v633
    %v830 = vpack.c.b16 %v638, %v634
    %v831 = vpack.c.b16 %v639, %v635
    %v832 = vpack.c.b16 %v644, %v640
    %v833 = vpack.c.b16 %v645, %v641
    %v834 = vpack.c.b16 %v646, %v642
    %v835 = vpack.c.b16 %v647, %v643
    %v836 = vpack.c.b16 %v652, %v648
    %v837 = vpack.c.b16 %v653, %v649
    %v838 = vpack.c.b16 %v654, %v650
    %v839 = vpack.c.b16 %v655, %v651
    %v840 = vpack.c.b16 %v660, %v656
    %v841 = vpack.c.b16 %v661, %v657
    %v842 = vpack.c.b16 %v662, %v658
    %v843 = vpack.c.b16 %v663, %v659
    %v844 = vpack.c.b16 %v668, %v664
    %v845 = vpack.c.b16 %v669, %v665
    %v846 = vpack.c.b16 %v670, %v666
    %v847 = vpack.c.b16 %v671, %v667
    %v848 = vpack.c.b16 %v676, %v672
    %v849 = vpack.c.b16 %v677, %v673
    %v850 = vpack.c.b16 %v678, %v674
    %v851 = vpack.c.b16 %v679, %v675
    %v852 = vpack.c.b16 %v684, %v680
    %v853 = vpack.c.b16 %v685, %v681
    %v854 = vpack.c.b16 %v686, %v682
    %v855 = vpack.c.b16 %v687, %v683
    %v856 = vpack.c.b16 %v692, %v688
    %v857 = vpack.c.b16 %v693, %v689
    %v858 = vpack.c.b16 %v694, %v690
    %v859 = vpack.c.b16 %v695, %v691
    %v860 = vpack.c.b16 %v700, %v696
    %v861 = vpack.c.b16 %v701, %v697
    %v862 = vpack.c.b16 %v702, %v698
    %v863 = vpack.c.b16 %v703, %v699
    %v864 = vpack.c.b16 %v708, %v704
    %v865 = vpack.c.b16 %v709, %v705
    %v866 = vpack.c.b16 %v710, %v706
    %v867 = vpack.c.b16 %v711, %v707
    %v868 = vpack.c.b16 %v716, %v712
    %v869 = vpack.c.b16 %v717, %v713
    %v870 = vpack.c.b16 %v718, %v714
    %v871 = vpack.c.b16 %v719, %v715
    %v872 = vpack.c.b16 %v724, %v720
    %v873 = vpack.c.b16 %v725, %v721
    %v874 = vpack.c.b16 %v726, %v722
    %v875 = vpack.c.b16 %v727, %v723
    %v876 = vpack.c.b16 %v732, %v728
    %v877 = vpack.c.b16 %v733, %v729
    %v878 = vpack.c.b16 %v734, %v730
    %v879 = vpack.c.b16 %v735, %v731
    %v880 = vpack.c.b16 %v740, %v736
    %v881 = vpack.c.b16 %v741, %v737
    %v882 = vpack.c.b16 %v742, %v738
    %v883 = vpack.c.b16 %v743, %v739
    %v884 = vpack.c.b16 %v748, %v744
    %v885 = vpack.c.b16 %v749, %v745
    %v886 = vpack.c.b16 %v750, %v746
    %v887 = vpack.c.b16 %v751, %v747
    %v888 = vpack.c.b16 %v756, %v752
    %v889 = vpack.c.b16 %v757, %v753
    %v890 = vpack.c.b16 %v758, %v754
    %v891 = vpack.c.b16 %v759, %v755
    %v892 = vpack.c.b16 %v764, %v760
    %v893 = vpack.c.b16 %v765, %v761
    %v894 = vpack.c.b16 %v766, %v762
    %v895 = vpack.c.b16 %v767, %v763
    %1024 = vmatprep.subr.bf16.mxu0 %v769
    %1025 = vmatpush1.bf16.msra.mxu0 %v768
    %1026 = vmatprep.subr.bf16.mxu0 %v773
    %1027 = vmatpush1.bf16.msra.mxu0 %v772
    %1028 = vmatprep.subr.bf16.mxu0 %v777
    %1029 = vmatpush1.bf16.msra.mxu0 %v776
    %1030 = vmatprep.subr.bf16.mxu0 %v781
    %1031 = vmatpush1.bf16.msra.mxu0 %v780
    %1032 = vmatprep.subr.bf16.mxu0 %v785
    %1033 = vmatpush1.bf16.msra.mxu0 %v784
    %1034 = vmatprep.subr.bf16.mxu0 %v789
    %1035 = vmatpush1.bf16.msra.mxu0 %v788
    %1036 = vmatprep.subr.bf16.mxu0 %v793
    %1037 = vmatpush1.bf16.msra.mxu0 %v792
    %1038 = vmatprep.subr.bf16.mxu0 %v797
    %1039 = vmatpush1.bf16.msra.mxu0 %v796
    %1040 = vmatprep.subr.bf16.mxu0 %v801
    %1041 = vmatpush1.bf16.msra.mxu0 %v800
    %1042 = vmatprep.subr.bf16.mxu0 %v805
    %1043 = vmatpush1.bf16.msra.mxu0 %v804
    %1044 = vmatprep.subr.bf16.mxu0 %v809
    %1045 = vmatpush1.bf16.msra.mxu0 %v808
    %1046 = vmatprep.subr.bf16.mxu0 %v813
    %1047 = vmatpush1.bf16.msra.mxu0 %v812
    %1048 = vmatprep.subr.bf16.mxu0 %v817
    %1049 = vmatpush1.bf16.msra.mxu0 %v816
    %1050 = vmatprep.subr.bf16.mxu0 %v821
    %1051 = vmatpush1.bf16.msra.mxu0 %v820
    %1052 = vmatprep.subr.bf16.mxu0 %v825
    %1053 = vmatpush1.bf16.msra.mxu0 %v824
    %1054 = vmatprep.subr.bf16.mxu0 %v829
    %1055 = vmatpush1.bf16.msra.mxu0 %v828
    %1056 = vmatprep.mubr.bf16.mxu0 %v231
    %1057 = vmatmul.mubr.bf16.gmra.mrb[0].mxu0 %v230
    %v1058 = vpop.f32.mrb[0].mxu0
    %v1059 = vadd.f32 %v367, %v1058
    %v1060 = vpop.f32.mrb[0].mxu0
    %v1061 = vadd.f32 %v371, %v1060
    %v1062 = vpop.f32.mrb[0].mxu0
    %v1063 = vpop.f32.mrb[0].mxu0
    %1064 = vdwg.mxu0
    %1065 = vmatprep.subr.bf16.mxu0 %v833
    %1066 = vmatpush1.bf16.msra.mxu0 %v832
    %1067 = vmatprep.subr.bf16.mxu0 %v837
    %1068 = vmatpush1.bf16.msra.mxu0 %v836
    %1069 = vmatprep.subr.bf16.mxu0 %v841
    %1070 = vmatpush1.bf16.msra.mxu0 %v840
    %1071 = vmatprep.subr.bf16.mxu0 %v845
    %1072 = vmatpush1.bf16.msra.mxu0 %v844
    %1073 = vmatprep.subr.bf16.mxu0 %v849
    %1074 = vmatpush1.bf16.msra.mxu0 %v848
    %1075 = vmatprep.subr.bf16.mxu0 %v853
    %1076 = vmatpush1.bf16.msra.mxu0 %v852
    %1077 = vmatprep.subr.bf16.mxu0 %v857
    %1078 = vmatpush1.bf16.msra.mxu0 %v856
    %1079 = vmatprep.subr.bf16.mxu0 %v861
    %1080 = vmatpush1.bf16.msra.mxu0 %v860
    %1081 = vmatprep.subr.bf16.mxu0 %v865
    %1082 = vmatpush1.bf16.msra.mxu0 %v864
    %1083 = vmatprep.subr.bf16.mxu0 %v869
    %1084 = vmatpush1.bf16.msra.mxu0 %v868
    %1085 = vmatprep.subr.bf16.mxu0 %v873
    %1086 = vmatpush1.bf16.msra.mxu0 %v872
    %1087 = vmatprep.subr.bf16.mxu0 %v877
    %1088 = vmatpush1.bf16.msra.mxu0 %v876
    %1089 = vmatprep.subr.bf16.mxu0 %v881
    %1090 = vmatpush1.bf16.msra.mxu0 %v880
    %1091 = vmatprep.subr.bf16.mxu0 %v885
    %1092 = vmatpush1.bf16.msra.mxu0 %v884
    %1093 = vmatprep.subr.bf16.mxu0 %v889
    %1094 = vmatpush1.bf16.msra.mxu0 %v888
    %1095 = vmatprep.subr.bf16.mxu0 %v893
    %1096 = vmatpush1.bf16.msra.mxu0 %v892
    %1097 = vmatprep.mubr.bf16.mxu0 %v233
    %1098 = vmatmul.mubr.bf16.gmra.mrb[0].mxu0 %v232
    %v1099 = vpop.f32.mrb[0].mxu0
    %v1100 = vadd.f32 %v1059, %v1099
    %v1101 = vpop.f32.mrb[0].mxu0
    %v1102 = vadd.f32 %v1061, %v1101
    %v1103 = vpop.f32.mrb[0].mxu0
    %v1104 = vpop.f32.mrb[0].mxu0
    %1105 = vdwg.mxu0
    %1106 = vmatprep.subr.bf16.mxu0 %v771
    %1107 = vmatpush1.bf16.msra.mxu0 %v770
    %1108 = vmatprep.subr.bf16.mxu0 %v775
    %1109 = vmatpush1.bf16.msra.mxu0 %v774
    %1110 = vmatprep.subr.bf16.mxu0 %v779
    %1111 = vmatpush1.bf16.msra.mxu0 %v778
    %1112 = vmatprep.subr.bf16.mxu0 %v783
    %1113 = vmatpush1.bf16.msra.mxu0 %v782
    %1114 = vmatprep.subr.bf16.mxu0 %v787
    %1115 = vmatpush1.bf16.msra.mxu0 %v786
    %1116 = vmatprep.subr.bf16.mxu0 %v791
    %1117 = vmatpush1.bf16.msra.mxu0 %v790
    %1118 = vmatprep.subr.bf16.mxu0 %v795
    %1119 = vmatpush1.bf16.msra.mxu0 %v794
    %1120 = vmatprep.subr.bf16.mxu0 %v799
    %1121 = vmatpush1.bf16.msra.mxu0 %v798
    %1122 = vmatprep.subr.bf16.mxu0 %v803
    %1123 = vmatpush1.bf16.msra.mxu0 %v802
    %1124 = vmatprep.subr.bf16.mxu0 %v807
    %1125 = vmatpush1.bf16.msra.mxu0 %v806
    %1126 = vmatprep.subr.bf16.mxu0 %v811
    %1127 = vmatpush1.bf16.msra.mxu0 %v810
    %1128 = vmatprep.subr.bf16.mxu0 %v815
    %1129 = vmatpush1.bf16.msra.mxu0 %v814
    %1130 = vmatprep.subr.bf16.mxu0 %v819
    %1131 = vmatpush1.bf16.msra.mxu0 %v818
    %1132 = vmatprep.subr.bf16.mxu0 %v823
    %1133 = vmatpush1.bf16.msra.mxu0 %v822
    %1134 = vmatprep.subr.bf16.mxu0 %v827
    %1135 = vmatpush1.bf16.msra.mxu0 %v826
    %1136 = vmatprep.subr.bf16.mxu0 %v831
    %1137 = vmatpush1.bf16.msra.mxu0 %v830
    %1138 = vmatprep.mubr.bf16.mxu0 %v231
    %1139 = vmatmul.mubr.bf16.gmra.mrb[0].mxu0 %v230
    %v1140 = vpop.f32.mrb[0].mxu0
    %v1141 = vadd.f32 %v375, %v1140
    %v1142 = vpop.f32.mrb[0].mxu0
    %v1143 = vadd.f32 %v379, %v1142
    %v1144 = vpop.f32.mrb[0].mxu0
    %v1145 = vpop.f32.mrb[0].mxu0
    %1146 = vdwg.mxu0
    %1147 = vmatprep.subr.bf16.mxu0 %v835
    %1148 = vmatpush1.bf16.msra.mxu0 %v834
    %1149 = vmatprep.subr.bf16.mxu0 %v839
    %1150 = vmatpush1.bf16.msra.mxu0 %v838
    %1151 = vmatprep.subr.bf16.mxu0 %v843
    %1152 = vmatpush1.bf16.msra.mxu0 %v842
    %1153 = vmatprep.subr.bf16.mxu0 %v847
    %1154 = vmatpush1.bf16.msra.mxu0 %v846
    %1155 = vmatprep.subr.bf16.mxu0 %v851
    %1156 = vmatpush1.bf16.msra.mxu0 %v850
    %1157 = vmatprep.subr.bf16.mxu0 %v855
    %1158 = vmatpush1.bf16.msra.mxu0 %v854
    %1159 = vmatprep.subr.bf16.mxu0 %v859
    %1160 = vmatpush1.bf16.msra.mxu0 %v858
    %1161 = vmatprep.subr.bf16.mxu0 %v863
    %1162 = vmatpush1.bf16.msra.mxu0 %v862
    %1163 = vmatprep.subr.bf16.mxu0 %v867
    %1164 = vmatpush1.bf16.msra.mxu0 %v866
    %1165 = vmatprep.subr.bf16.mxu0 %v871
    %1166 = vmatpush1.bf16.msra.mxu0 %v870
    %1167 = vmatprep.subr.bf16.mxu0 %v875
    %1168 = vmatpush1.bf16.msra.mxu0 %v874
    %1169 = vmatprep.subr.bf16.mxu0 %v879
    %1170 = vmatpush1.bf16.msra.mxu0 %v878
    %1171 = vmatprep.subr.bf16.mxu0 %v883
    %1172 = vmatpush1.bf16.msra.mxu0 %v882
    %1173 = vmatprep.subr.bf16.mxu0 %v887
    %1174 = vmatpush1.bf16.msra.mxu0 %v886
    %1175 = vmatprep.subr.bf16.mxu0 %v891
    %1176 = vmatpush1.bf16.msra.mxu0 %v890
    %1177 = vmatprep.subr.bf16.mxu0 %v895
    %1178 = vmatpush1.bf16.msra.mxu0 %v894
    %1179 = vmatprep.mubr.bf16.mxu0 %v233
    %1180 = vmatmul.mubr.bf16.gmra.mrb[0].mxu0 %v232
    %v1181 = vpop.f32.mrb[0].mxu0
    %v1182 = vadd.f32 %v1141, %v1181
    %v1183 = vpop.f32.mrb[0].mxu0
    %v1184 = vadd.f32 %v1143, %v1183
    %v1185 = vpop.f32.mrb[0].mxu0
    %v1186 = vpop.f32.mrb[0].mxu0
    %1187 = vdwg.mxu0
    %v1188 = vmul.f32 %v1100, 0.01
    %v1189 = vmul.f32 %v1102, 0.01
    %v1190 = vmul.f32 %v1182, 0.01
    %v1191 = vmul.f32 %v1184, 0.01
    %v1192 = vmax.f32 %v1100, %v1188
    %v1193 = vmax.f32 %v1102, %v1189
    %v1194 = vmax.f32 %v1182, %v1190
    %v1195 = vmax.f32 %v1184, %v1191
    %v1196 = vpack.c.bf16 %v1192, %v1192
    %v1197 = vpack.c.bf16 %v1193, %v1193
    %v1198 = vpack.c.bf16 %v1194, %v1194
    %v1199 = vpack.c.bf16 %v1195, %v1195
    %v1200 = vld [vmem:[#allocation7] sm:$0xff]
    %v1201 = vld [vmem:[#allocation7 + $0x8] sm:$0xff]
    %v1202 = vld [vmem:[#allocation7 + $0x10] sm:$0xff]
    %v1203 = vld [vmem:[#allocation7 + $0x18] sm:$0xff]
    %v1204 = vld [vmem:[#allocation7 + $0x20] sm:$0xff]
    %v1205 = vld [vmem:[#allocation7 + $0x28] sm:$0xff]
    %v1206 = vld [vmem:[#allocation7 + $0x30] sm:$0xff]
    %v1207 = vld [vmem:[#allocation7 + $0x38] sm:$0xff]
    %v1208 = vld [vmem:[#allocation7 + $0x40] sm:$0xff]
    %v1209 = vld [vmem:[#allocation7 + $0x48] sm:$0xff]
    %v1210 = vld [vmem:[#allocation7 + $0x50] sm:$0xff]
    %v1211 = vld [vmem:[#allocation7 + $0x58] sm:$0xff]
    %v1212 = vld [vmem:[#allocation7 + $0x60] sm:$0xff]
    %v1213 = vld [vmem:[#allocation7 + $0x68] sm:$0xff]
    %v1214 = vld [vmem:[#allocation7 + $0x70] sm:$0xff]
    %v1215 = vld [vmem:[#allocation7 + $0x78] sm:$0xff]
    %v1216 = vld [vmem:[#allocation7 + $0x80] sm:$0xff]
    %v1217 = vld [vmem:[#allocation7 + $0x88] sm:$0xff]
    %v1218 = vld [vmem:[#allocation7 + $0x90] sm:$0xff]
    %v1219 = vld [vmem:[#allocation7 + $0x98] sm:$0xff]
    %v1220 = vld [vmem:[#allocation7 + $0xa0] sm:$0xff]
    %v1221 = vld [vmem:[#allocation7 + $0xa8] sm:$0xff]
    %v1222 = vld [vmem:[#allocation7 + $0xb0] sm:$0xff]
    %v1223 = vld [vmem:[#allocation7 + $0xb8] sm:$0xff]
    %v1224 = vld [vmem:[#allocation7 + $0xc0] sm:$0xff]
    %v1225 = vld [vmem:[#allocation7 + $0xc8] sm:$0xff]
    %v1226 = vld [vmem:[#allocation7 + $0xd0] sm:$0xff]
    %v1227 = vld [vmem:[#allocation7 + $0xd8] sm:$0xff]
    %v1228 = vld [vmem:[#allocation7 + $0xe0] sm:$0xff]
    %v1229 = vld [vmem:[#allocation7 + $0xe8] sm:$0xff]
    %v1230 = vld [vmem:[#allocation7 + $0xf0] sm:$0xff]
    %v1231 = vld [vmem:[#allocation7 + $0xf8] sm:$0xff]
    %v1232 = vld [vmem:[#allocation7 + $0x100] sm:$0xff]
    %v1233 = vld [vmem:[#allocation7 + $0x108] sm:$0xff]
    %v1234 = vld [vmem:[#allocation7 + $0x110] sm:$0xff]
    %v1235 = vld [vmem:[#allocation7 + $0x118] sm:$0xff]
    %v1236 = vld [vmem:[#allocation7 + $0x120] sm:$0xff]
    %v1237 = vld [vmem:[#allocation7 + $0x128] sm:$0xff]
    %v1238 = vld [vmem:[#allocation7 + $0x130] sm:$0xff]
    %v1239 = vld [vmem:[#allocation7 + $0x138] sm:$0xff]
    %v1240 = vld [vmem:[#allocation7 + $0x140] sm:$0xff]
    %v1241 = vld [vmem:[#allocation7 + $0x148] sm:$0xff]
    %v1242 = vld [vmem:[#allocation7 + $0x150] sm:$0xff]
    %v1243 = vld [vmem:[#allocation7 + $0x158] sm:$0xff]
    %v1244 = vld [vmem:[#allocation7 + $0x160] sm:$0xff]
    %v1245 = vld [vmem:[#allocation7 + $0x168] sm:$0xff]
    %v1246 = vld [vmem:[#allocation7 + $0x170] sm:$0xff]
    %v1247 = vld [vmem:[#allocation7 + $0x178] sm:$0xff]
    %v1248 = vld [vmem:[#allocation7 + $0x180] sm:$0xff]
    %v1249 = vld [vmem:[#allocation7 + $0x188] sm:$0xff]
    %v1250 = vld [vmem:[#allocation7 + $0x190] sm:$0xff]
    %v1251 = vld [vmem:[#allocation7 + $0x198] sm:$0xff]
    %v1252 = vld [vmem:[#allocation7 + $0x1a0] sm:$0xff]
    %v1253 = vld [vmem:[#allocation7 + $0x1a8] sm:$0xff]
    %v1254 = vld [vmem:[#allocation7 + $0x1b0] sm:$0xff]
    %v1255 = vld [vmem:[#allocation7 + $0x1b8] sm:$0xff]
    %v1256 = vld [vmem:[#allocation7 + $0x1c0] sm:$0xff]
    %v1257 = vld [vmem:[#allocation7 + $0x1c8] sm:$0xff]
    %v1258 = vld [vmem:[#allocation7 + $0x1d0] sm:$0xff]
    %v1259 = vld [vmem:[#allocation7 + $0x1d8] sm:$0xff]
    %v1260 = vld [vmem:[#allocation7 + $0x1e0] sm:$0xff]
    %v1261 = vld [vmem:[#allocation7 + $0x1e8] sm:$0xff]
    %v1262 = vld [vmem:[#allocation7 + $0x1f0] sm:$0xff]
    %v1263 = vld [vmem:[#allocation7 + $0x1f8] sm:$0xff]
    %v1264 = vld [vmem:[#allocation7 + $0x200] sm:$0xff]
    %v1265 = vld [vmem:[#allocation7 + $0x208] sm:$0xff]
    %v1266 = vld [vmem:[#allocation7 + $0x210] sm:$0xff]
    %v1267 = vld [vmem:[#allocation7 + $0x218] sm:$0xff]
    %v1268 = vld [vmem:[#allocation7 + $0x220] sm:$0xff]
    %v1269 = vld [vmem:[#allocation7 + $0x228] sm:$0xff]
    %v1270 = vld [vmem:[#allocation7 + $0x230] sm:$0xff]
    %v1271 = vld [vmem:[#allocation7 + $0x238] sm:$0xff]
    %v1272 = vld [vmem:[#allocation7 + $0x240] sm:$0xff]
    %v1273 = vld [vmem:[#allocation7 + $0x248] sm:$0xff]
    %v1274 = vld [vmem:[#allocation7 + $0x250] sm:$0xff]
    %v1275 = vld [vmem:[#allocation7 + $0x258] sm:$0xff]
    %v1276 = vld [vmem:[#allocation7 + $0x260] sm:$0xff]
    %v1277 = vld [vmem:[#allocation7 + $0x268] sm:$0xff]
    %v1278 = vld [vmem:[#allocation7 + $0x270] sm:$0xff]
    %v1279 = vld [vmem:[#allocation7 + $0x278] sm:$0xff]
    %v1280 = vld [vmem:[#allocation7 + $0x280] sm:$0xff]
    %v1281 = vld [vmem:[#allocation7 + $0x288] sm:$0xff]
    %v1282 = vld [vmem:[#allocation7 + $0x290] sm:$0xff]
    %v1283 = vld [vmem:[#allocation7 + $0x298] sm:$0xff]
    %v1284 = vld [vmem:[#allocation7 + $0x2a0] sm:$0xff]
    %v1285 = vld [vmem:[#allocation7 + $0x2a8] sm:$0xff]
    %v1286 = vld [vmem:[#allocation7 + $0x2b0] sm:$0xff]
    %v1287 = vld [vmem:[#allocation7 + $0x2b8] sm:$0xff]
    %v1288 = vld [vmem:[#allocation7 + $0x2c0] sm:$0xff]
    %v1289 = vld [vmem:[#allocation7 + $0x2c8] sm:$0xff]
    %v1290 = vld [vmem:[#allocation7 + $0x2d0] sm:$0xff]
    %v1291 = vld [vmem:[#allocation7 + $0x2d8] sm:$0xff]
    %v1292 = vld [vmem:[#allocation7 + $0x2e0] sm:$0xff]
    %v1293 = vld [vmem:[#allocation7 + $0x2e8] sm:$0xff]
    %v1294 = vld [vmem:[#allocation7 + $0x2f0] sm:$0xff]
    %v1295 = vld [vmem:[#allocation7 + $0x2f8] sm:$0xff]
    %v1296 = vld [vmem:[#allocation7 + $0x300] sm:$0xff]
    %v1297 = vld [vmem:[#allocation7 + $0x308] sm:$0xff]
    %v1298 = vld [vmem:[#allocation7 + $0x310] sm:$0xff]
    %v1299 = vld [vmem:[#allocation7 + $0x318] sm:$0xff]
    %v1300 = vld [vmem:[#allocation7 + $0x320] sm:$0xff]
    %v1301 = vld [vmem:[#allocation7 + $0x328] sm:$0xff]
    %v1302 = vld [vmem:[#allocation7 + $0x330] sm:$0xff]
    %v1303 = vld [vmem:[#allocation7 + $0x338] sm:$0xff]
    %v1304 = vld [vmem:[#allocation7 + $0x340] sm:$0xff]
    %v1305 = vld [vmem:[#allocation7 + $0x348] sm:$0xff]
    %v1306 = vld [vmem:[#allocation7 + $0x350] sm:$0xff]
    %v1307 = vld [vmem:[#allocation7 + $0x358] sm:$0xff]
    %v1308 = vld [vmem:[#allocation7 + $0x360] sm:$0xff]
    %v1309 = vld [vmem:[#allocation7 + $0x368] sm:$0xff]
    %v1310 = vld [vmem:[#allocation7 + $0x370] sm:$0xff]
    %v1311 = vld [vmem:[#allocation7 + $0x378] sm:$0xff]
    %v1312 = vld [vmem:[#allocation7 + $0x380] sm:$0xff]
    %v1313 = vld [vmem:[#allocation7 + $0x388] sm:$0xff]
    %v1314 = vld [vmem:[#allocation7 + $0x390] sm:$0xff]
    %v1315 = vld [vmem:[#allocation7 + $0x398] sm:$0xff]
    %v1316 = vld [vmem:[#allocation7 + $0x3a0] sm:$0xff]
    %v1317 = vld [vmem:[#allocation7 + $0x3a8] sm:$0xff]
    %v1318 = vld [vmem:[#allocation7 + $0x3b0] sm:$0xff]
    %v1319 = vld [vmem:[#allocation7 + $0x3b8] sm:$0xff]
    %v1320 = vld [vmem:[#allocation7 + $0x3c0] sm:$0xff]
    %v1321 = vld [vmem:[#allocation7 + $0x3c8] sm:$0xff]
    %v1322 = vld [vmem:[#allocation7 + $0x3d0] sm:$0xff]
    %v1323 = vld [vmem:[#allocation7 + $0x3d8] sm:$0xff]
    %v1324 = vld [vmem:[#allocation7 + $0x3e0] sm:$0xff]
    %v1325 = vld [vmem:[#allocation7 + $0x3e8] sm:$0xff]
    %v1326 = vld [vmem:[#allocation7 + $0x3f0] sm:$0xff]
    %v1327 = vld [vmem:[#allocation7 + $0x3f8] sm:$0xff]
    %v1328 = vld [vmem:[%s6] sm:$0xf]
    %v1330 = vlaneseq
    %v1331 = vshrl.u32 %v1330, 7
    %v1332 = vsub.s32 0, %v1331
    %v1333 = vrot.slane %v1328, %v1332
    %v1334 = vlaneseq
    %v1335 = vshrl.u32 %v1334, 7
    %v1336 = vsub.s32 1, %v1335
    %v1337 = vrot.slane %v1328, %v1336
    %v1338 = vlaneseq
    %v1339 = vshrl.u32 %v1338, 7
    %v1340 = vsub.s32 2, %v1339
    %v1341 = vrot.slane %v1328, %v1340
    %v1342 = vlaneseq
    %v1343 = vshrl.u32 %v1342, 7
    %v1344 = vsub.s32 3, %v1343
    %v1345 = vrot.slane %v1328, %v1344
    %v1478 = vunpack.c.l.b16 %v1200
    %v1479 = vunpack.c.h.b16 %v1200
    %v1480 = vunpack.c.l.b16 %v1201
    %v1481 = vunpack.c.h.b16 %v1201
    %v1482 = vunpack.c.l.b16 %v1202
    %v1483 = vunpack.c.h.b16 %v1202
    %v1484 = vunpack.c.l.b16 %v1203
    %v1485 = vunpack.c.h.b16 %v1203
    %v1486 = vunpack.c.l.b16 %v1204
    %v1487 = vunpack.c.h.b16 %v1204
    %v1488 = vunpack.c.l.b16 %v1205
    %v1489 = vunpack.c.h.b16 %v1205
    %v1490 = vunpack.c.l.b16 %v1206
    %v1491 = vunpack.c.h.b16 %v1206
    %v1492 = vunpack.c.l.b16 %v1207
    %v1493 = vunpack.c.h.b16 %v1207
    %v1494 = vunpack.c.l.b16 %v1208
    %v1495 = vunpack.c.h.b16 %v1208
    %v1496 = vunpack.c.l.b16 %v1209
    %v1497 = vunpack.c.h.b16 %v1209
    %v1498 = vunpack.c.l.b16 %v1210
    %v1499 = vunpack.c.h.b16 %v1210
    %v1500 = vunpack.c.l.b16 %v1211
    %v1501 = vunpack.c.h.b16 %v1211
    %v1502 = vunpack.c.l.b16 %v1212
    %v1503 = vunpack.c.h.b16 %v1212
    %v1504 = vunpack.c.l.b16 %v1213
    %v1505 = vunpack.c.h.b16 %v1213
    %v1506 = vunpack.c.l.b16 %v1214
    %v1507 = vunpack.c.h.b16 %v1214
    %v1508 = vunpack.c.l.b16 %v1215
    %v1509 = vunpack.c.h.b16 %v1215
    %v1510 = vunpack.c.l.b16 %v1216
    %v1511 = vunpack.c.h.b16 %v1216
    %v1512 = vunpack.c.l.b16 %v1217
    %v1513 = vunpack.c.h.b16 %v1217
    %v1514 = vunpack.c.l.b16 %v1218
    %v1515 = vunpack.c.h.b16 %v1218
    %v1516 = vunpack.c.l.b16 %v1219
    %v1517 = vunpack.c.h.b16 %v1219
    %v1518 = vunpack.c.l.b16 %v1220
    %v1519 = vunpack.c.h.b16 %v1220
    %v1520 = vunpack.c.l.b16 %v1221
    %v1521 = vunpack.c.h.b16 %v1221
    %v1522 = vunpack.c.l.b16 %v1222
    %v1523 = vunpack.c.h.b16 %v1222
    %v1524 = vunpack.c.l.b16 %v1223
    %v1525 = vunpack.c.h.b16 %v1223
    %v1526 = vunpack.c.l.b16 %v1224
    %v1527 = vunpack.c.h.b16 %v1224
    %v1528 = vunpack.c.l.b16 %v1225
    %v1529 = vunpack.c.h.b16 %v1225
    %v1530 = vunpack.c.l.b16 %v1226
    %v1531 = vunpack.c.h.b16 %v1226
    %v1532 = vunpack.c.l.b16 %v1227
    %v1533 = vunpack.c.h.b16 %v1227
    %v1534 = vunpack.c.l.b16 %v1228
    %v1535 = vunpack.c.h.b16 %v1228
    %v1536 = vunpack.c.l.b16 %v1229
    %v1537 = vunpack.c.h.b16 %v1229
    %v1538 = vunpack.c.l.b16 %v1230
    %v1539 = vunpack.c.h.b16 %v1230
    %v1540 = vunpack.c.l.b16 %v1231
    %v1541 = vunpack.c.h.b16 %v1231
    %v1542 = vunpack.c.l.b16 %v1232
    %v1543 = vunpack.c.h.b16 %v1232
    %v1544 = vunpack.c.l.b16 %v1233
    %v1545 = vunpack.c.h.b16 %v1233
    %v1546 = vunpack.c.l.b16 %v1234
    %v1547 = vunpack.c.h.b16 %v1234
    %v1548 = vunpack.c.l.b16 %v1235
    %v1549 = vunpack.c.h.b16 %v1235
    %v1550 = vunpack.c.l.b16 %v1236
    %v1551 = vunpack.c.h.b16 %v1236
    %v1552 = vunpack.c.l.b16 %v1237
    %v1553 = vunpack.c.h.b16 %v1237
    %v1554 = vunpack.c.l.b16 %v1238
    %v1555 = vunpack.c.h.b16 %v1238
    %v1556 = vunpack.c.l.b16 %v1239
    %v1557 = vunpack.c.h.b16 %v1239
    %v1558 = vunpack.c.l.b16 %v1240
    %v1559 = vunpack.c.h.b16 %v1240
    %v1560 = vunpack.c.l.b16 %v1241
    %v1561 = vunpack.c.h.b16 %v1241
    %v1562 = vunpack.c.l.b16 %v1242
    %v1563 = vunpack.c.h.b16 %v1242
    %v1564 = vunpack.c.l.b16 %v1243
    %v1565 = vunpack.c.h.b16 %v1243
    %v1566 = vunpack.c.l.b16 %v1244
    %v1567 = vunpack.c.h.b16 %v1244
    %v1568 = vunpack.c.l.b16 %v1245
    %v1569 = vunpack.c.h.b16 %v1245
    %v1570 = vunpack.c.l.b16 %v1246
    %v1571 = vunpack.c.h.b16 %v1246
    %v1572 = vunpack.c.l.b16 %v1247
    %v1573 = vunpack.c.h.b16 %v1247
    %v1574 = vunpack.c.l.b16 %v1248
    %v1575 = vunpack.c.h.b16 %v1248
    %v1576 = vunpack.c.l.b16 %v1249
    %v1577 = vunpack.c.h.b16 %v1249
    %v1578 = vunpack.c.l.b16 %v1250
    %v1579 = vunpack.c.h.b16 %v1250
    %v1580 = vunpack.c.l.b16 %v1251
    %v1581 = vunpack.c.h.b16 %v1251
    %v1582 = vunpack.c.l.b16 %v1252
    %v1583 = vunpack.c.h.b16 %v1252
    %v1584 = vunpack.c.l.b16 %v1253
    %v1585 = vunpack.c.h.b16 %v1253
    %v1586 = vunpack.c.l.b16 %v1254
    %v1587 = vunpack.c.h.b16 %v1254
    %v1588 = vunpack.c.l.b16 %v1255
    %v1589 = vunpack.c.h.b16 %v1255
    %v1590 = vunpack.c.l.b16 %v1256
    %v1591 = vunpack.c.h.b16 %v1256
    %v1592 = vunpack.c.l.b16 %v1257
    %v1593 = vunpack.c.h.b16 %v1257
    %v1594 = vunpack.c.l.b16 %v1258
    %v1595 = vunpack.c.h.b16 %v1258
    %v1596 = vunpack.c.l.b16 %v1259
    %v1597 = vunpack.c.h.b16 %v1259
    %v1598 = vunpack.c.l.b16 %v1260
    %v1599 = vunpack.c.h.b16 %v1260
    %v1600 = vunpack.c.l.b16 %v1261
    %v1601 = vunpack.c.h.b16 %v1261
    %v1602 = vunpack.c.l.b16 %v1262
    %v1603 = vunpack.c.h.b16 %v1262
    %v1604 = vunpack.c.l.b16 %v1263
    %v1605 = vunpack.c.h.b16 %v1263
    %v1606 = vunpack.c.l.b16 %v1264
    %v1607 = vunpack.c.h.b16 %v1264
    %v1608 = vunpack.c.l.b16 %v1265
    %v1609 = vunpack.c.h.b16 %v1265
    %v1610 = vunpack.c.l.b16 %v1266
    %v1611 = vunpack.c.h.b16 %v1266
    %v1612 = vunpack.c.l.b16 %v1267
    %v1613 = vunpack.c.h.b16 %v1267
    %v1614 = vunpack.c.l.b16 %v1268
    %v1615 = vunpack.c.h.b16 %v1268
    %v1616 = vunpack.c.l.b16 %v1269
    %v1617 = vunpack.c.h.b16 %v1269
    %v1618 = vunpack.c.l.b16 %v1270
    %v1619 = vunpack.c.h.b16 %v1270
    %v1620 = vunpack.c.l.b16 %v1271
    %v1621 = vunpack.c.h.b16 %v1271
    %v1622 = vunpack.c.l.b16 %v1272
    %v1623 = vunpack.c.h.b16 %v1272
    %v1624 = vunpack.c.l.b16 %v1273
    %v1625 = vunpack.c.h.b16 %v1273
    %v1626 = vunpack.c.l.b16 %v1274
    %v1627 = vunpack.c.h.b16 %v1274
    %v1628 = vunpack.c.l.b16 %v1275
    %v1629 = vunpack.c.h.b16 %v1275
    %v1630 = vunpack.c.l.b16 %v1276
    %v1631 = vunpack.c.h.b16 %v1276
    %v1632 = vunpack.c.l.b16 %v1277
    %v1633 = vunpack.c.h.b16 %v1277
    %v1634 = vunpack.c.l.b16 %v1278
    %v1635 = vunpack.c.h.b16 %v1278
    %v1636 = vunpack.c.l.b16 %v1279
    %v1637 = vunpack.c.h.b16 %v1279
    %v1638 = vunpack.c.l.b16 %v1280
    %v1639 = vunpack.c.h.b16 %v1280
    %v1640 = vunpack.c.l.b16 %v1281
    %v1641 = vunpack.c.h.b16 %v1281
    %v1642 = vunpack.c.l.b16 %v1282
    %v1643 = vunpack.c.h.b16 %v1282
    %v1644 = vunpack.c.l.b16 %v1283
    %v1645 = vunpack.c.h.b16 %v1283
    %v1646 = vunpack.c.l.b16 %v1284
    %v1647 = vunpack.c.h.b16 %v1284
    %v1648 = vunpack.c.l.b16 %v1285
    %v1649 = vunpack.c.h.b16 %v1285
    %v1650 = vunpack.c.l.b16 %v1286
    %v1651 = vunpack.c.h.b16 %v1286
    %v1652 = vunpack.c.l.b16 %v1287
    %v1653 = vunpack.c.h.b16 %v1287
    %v1654 = vunpack.c.l.b16 %v1288
    %v1655 = vunpack.c.h.b16 %v1288
    %v1656 = vunpack.c.l.b16 %v1289
    %v1657 = vunpack.c.h.b16 %v1289
    %v1658 = vunpack.c.l.b16 %v1290
    %v1659 = vunpack.c.h.b16 %v1290
    %v1660 = vunpack.c.l.b16 %v1291
    %v1661 = vunpack.c.h.b16 %v1291
    %v1662 = vunpack.c.l.b16 %v1292
    %v1663 = vunpack.c.h.b16 %v1292
    %v1664 = vunpack.c.l.b16 %v1293
    %v1665 = vunpack.c.h.b16 %v1293
    %v1666 = vunpack.c.l.b16 %v1294
    %v1667 = vunpack.c.h.b16 %v1294
    %v1668 = vunpack.c.l.b16 %v1295
    %v1669 = vunpack.c.h.b16 %v1295
    %v1670 = vunpack.c.l.b16 %v1296
    %v1671 = vunpack.c.h.b16 %v1296
    %v1672 = vunpack.c.l.b16 %v1297
    %v1673 = vunpack.c.h.b16 %v1297
    %v1674 = vunpack.c.l.b16 %v1298
    %v1675 = vunpack.c.h.b16 %v1298
    %v1676 = vunpack.c.l.b16 %v1299
    %v1677 = vunpack.c.h.b16 %v1299
    %v1678 = vunpack.c.l.b16 %v1300
    %v1679 = vunpack.c.h.b16 %v1300
    %v1680 = vunpack.c.l.b16 %v1301
    %v1681 = vunpack.c.h.b16 %v1301
    %v1682 = vunpack.c.l.b16 %v1302
    %v1683 = vunpack.c.h.b16 %v1302
    %v1684 = vunpack.c.l.b16 %v1303
    %v1685 = vunpack.c.h.b16 %v1303
    %v1686 = vunpack.c.l.b16 %v1304
    %v1687 = vunpack.c.h.b16 %v1304
    %v1688 = vunpack.c.l.b16 %v1305
    %v1689 = vunpack.c.h.b16 %v1305
    %v1690 = vunpack.c.l.b16 %v1306
    %v1691 = vunpack.c.h.b16 %v1306
    %v1692 = vunpack.c.l.b16 %v1307
    %v1693 = vunpack.c.h.b16 %v1307
    %v1694 = vunpack.c.l.b16 %v1308
    %v1695 = vunpack.c.h.b16 %v1308
    %v1696 = vunpack.c.l.b16 %v1309
    %v1697 = vunpack.c.h.b16 %v1309
    %v1698 = vunpack.c.l.b16 %v1310
    %v1699 = vunpack.c.h.b16 %v1310
    %v1700 = vunpack.c.l.b16 %v1311
    %v1701 = vunpack.c.h.b16 %v1311
    %v1702 = vunpack.c.l.b16 %v1312
    %v1703 = vunpack.c.h.b16 %v1312
    %v1704 = vunpack.c.l.b16 %v1313
    %v1705 = vunpack.c.h.b16 %v1313
    %v1706 = vunpack.c.l.b16 %v1314
    %v1707 = vunpack.c.h.b16 %v1314
    %v1708 = vunpack.c.l.b16 %v1315
    %v1709 = vunpack.c.h.b16 %v1315
    %v1710 = vunpack.c.l.b16 %v1316
    %v1711 = vunpack.c.h.b16 %v1316
    %v1712 = vunpack.c.l.b16 %v1317
    %v1713 = vunpack.c.h.b16 %v1317
    %v1714 = vunpack.c.l.b16 %v1318
    %v1715 = vunpack.c.h.b16 %v1318
    %v1716 = vunpack.c.l.b16 %v1319
    %v1717 = vunpack.c.h.b16 %v1319
    %v1718 = vunpack.c.l.b16 %v1320
    %v1719 = vunpack.c.h.b16 %v1320
    %v1720 = vunpack.c.l.b16 %v1321
    %v1721 = vunpack.c.h.b16 %v1321
    %v1722 = vunpack.c.l.b16 %v1322
    %v1723 = vunpack.c.h.b16 %v1322
    %v1724 = vunpack.c.l.b16 %v1323
    %v1725 = vunpack.c.h.b16 %v1323
    %v1726 = vunpack.c.l.b16 %v1324
    %v1727 = vunpack.c.h.b16 %v1324
    %v1728 = vunpack.c.l.b16 %v1325
    %v1729 = vunpack.c.h.b16 %v1325
    %v1730 = vunpack.c.l.b16 %v1326
    %v1731 = vunpack.c.h.b16 %v1326
    %v1732 = vunpack.c.l.b16 %v1327
    %v1733 = vunpack.c.h.b16 %v1327
    %v1734 = vpack.c.b16 %v1482, %v1478
    %v1735 = vpack.c.b16 %v1483, %v1479
    %v1736 = vpack.c.b16 %v1484, %v1480
    %v1737 = vpack.c.b16 %v1485, %v1481
    %v1738 = vpack.c.b16 %v1490, %v1486
    %v1739 = vpack.c.b16 %v1491, %v1487
    %v1740 = vpack.c.b16 %v1492, %v1488
    %v1741 = vpack.c.b16 %v1493, %v1489
    %v1742 = vpack.c.b16 %v1498, %v1494
    %v1743 = vpack.c.b16 %v1499, %v1495
    %v1744 = vpack.c.b16 %v1500, %v1496
    %v1745 = vpack.c.b16 %v1501, %v1497
    %v1746 = vpack.c.b16 %v1506, %v1502
    %v1747 = vpack.c.b16 %v1507, %v1503
    %v1748 = vpack.c.b16 %v1508, %v1504
    %v1749 = vpack.c.b16 %v1509, %v1505
    %v1750 = vpack.c.b16 %v1514, %v1510
    %v1751 = vpack.c.b16 %v1515, %v1511
    %v1752 = vpack.c.b16 %v1516, %v1512
    %v1753 = vpack.c.b16 %v1517, %v1513
    %v1754 = vpack.c.b16 %v1522, %v1518
    %v1755 = vpack.c.b16 %v1523, %v1519
    %v1756 = vpack.c.b16 %v1524, %v1520
    %v1757 = vpack.c.b16 %v1525, %v1521
    %v1758 = vpack.c.b16 %v1530, %v1526
    %v1759 = vpack.c.b16 %v1531, %v1527
    %v1760 = vpack.c.b16 %v1532, %v1528
    %v1761 = vpack.c.b16 %v1533, %v1529
    %v1762 = vpack.c.b16 %v1538, %v1534
    %v1763 = vpack.c.b16 %v1539, %v1535
    %v1764 = vpack.c.b16 %v1540, %v1536
    %v1765 = vpack.c.b16 %v1541, %v1537
    %v1766 = vpack.c.b16 %v1546, %v1542
    %v1767 = vpack.c.b16 %v1547, %v1543
    %v1768 = vpack.c.b16 %v1548, %v1544
    %v1769 = vpack.c.b16 %v1549, %v1545
    %v1770 = vpack.c.b16 %v1554, %v1550
    %v1771 = vpack.c.b16 %v1555, %v1551
    %v1772 = vpack.c.b16 %v1556, %v1552
    %v1773 = vpack.c.b16 %v1557, %v1553
    %v1774 = vpack.c.b16 %v1562, %v1558
    %v1775 = vpack.c.b16 %v1563, %v1559
    %v1776 = vpack.c.b16 %v1564, %v1560
    %v1777 = vpack.c.b16 %v1565, %v1561
    %v1778 = vpack.c.b16 %v1570, %v1566
    %v1779 = vpack.c.b16 %v1571, %v1567
    %v1780 = vpack.c.b16 %v1572, %v1568
    %v1781 = vpack.c.b16 %v1573, %v1569
    %v1782 = vpack.c.b16 %v1578, %v1574
    %v1783 = vpack.c.b16 %v1579, %v1575
    %v1784 = vpack.c.b16 %v1580, %v1576
    %v1785 = vpack.c.b16 %v1581, %v1577
    %v1786 = vpack.c.b16 %v1586, %v1582
    %v1787 = vpack.c.b16 %v1587, %v1583
    %v1788 = vpack.c.b16 %v1588, %v1584
    %v1789 = vpack.c.b16 %v1589, %v1585
    %v1790 = vpack.c.b16 %v1594, %v1590
    %v1791 = vpack.c.b16 %v1595, %v1591
    %v1792 = vpack.c.b16 %v1596, %v1592
    %v1793 = vpack.c.b16 %v1597, %v1593
    %v1794 = vpack.c.b16 %v1602, %v1598
    %v1795 = vpack.c.b16 %v1603, %v1599
    %v1796 = vpack.c.b16 %v1604, %v1600
    %v1797 = vpack.c.b16 %v1605, %v1601
    %v1798 = vpack.c.b16 %v1610, %v1606
    %v1799 = vpack.c.b16 %v1611, %v1607
    %v1800 = vpack.c.b16 %v1612, %v1608
    %v1801 = vpack.c.b16 %v1613, %v1609
    %v1802 = vpack.c.b16 %v1618, %v1614
    %v1803 = vpack.c.b16 %v1619, %v1615
    %v1804 = vpack.c.b16 %v1620, %v1616
    %v1805 = vpack.c.b16 %v1621, %v1617
    %v1806 = vpack.c.b16 %v1626, %v1622
    %v1807 = vpack.c.b16 %v1627, %v1623
    %v1808 = vpack.c.b16 %v1628, %v1624
    %v1809 = vpack.c.b16 %v1629, %v1625
    %v1810 = vpack.c.b16 %v1634, %v1630
    %v1811 = vpack.c.b16 %v1635, %v1631
    %v1812 = vpack.c.b16 %v1636, %v1632
    %v1813 = vpack.c.b16 %v1637, %v1633
    %v1814 = vpack.c.b16 %v1642, %v1638
    %v1815 = vpack.c.b16 %v1643, %v1639
    %v1816 = vpack.c.b16 %v1644, %v1640
    %v1817 = vpack.c.b16 %v1645, %v1641
    %v1818 = vpack.c.b16 %v1650, %v1646
    %v1819 = vpack.c.b16 %v1651, %v1647
    %v1820 = vpack.c.b16 %v1652, %v1648
    %v1821 = vpack.c.b16 %v1653, %v1649
    %v1822 = vpack.c.b16 %v1658, %v1654
    %v1823 = vpack.c.b16 %v1659, %v1655
    %v1824 = vpack.c.b16 %v1660, %v1656
    %v1825 = vpack.c.b16 %v1661, %v1657
    %v1826 = vpack.c.b16 %v1666, %v1662
    %v1827 = vpack.c.b16 %v1667, %v1663
    %v1828 = vpack.c.b16 %v1668, %v1664
    %v1829 = vpack.c.b16 %v1669, %v1665
    %v1830 = vpack.c.b16 %v1674, %v1670
    %v1831 = vpack.c.b16 %v1675, %v1671
    %v1832 = vpack.c.b16 %v1676, %v1672
    %v1833 = vpack.c.b16 %v1677, %v1673
    %v1834 = vpack.c.b16 %v1682, %v1678
    %v1835 = vpack.c.b16 %v1683, %v1679
    %v1836 = vpack.c.b16 %v1684, %v1680
    %v1837 = vpack.c.b16 %v1685, %v1681
    %v1838 = vpack.c.b16 %v1690, %v1686
    %v1839 = vpack.c.b16 %v1691, %v1687
    %v1840 = vpack.c.b16 %v1692, %v1688
    %v1841 = vpack.c.b16 %v1693, %v1689
    %v1842 = vpack.c.b16 %v1698, %v1694
    %v1843 = vpack.c.b16 %v1699, %v1695
    %v1844 = vpack.c.b16 %v1700, %v1696
    %v1845 = vpack.c.b16 %v1701, %v1697
    %v1846 = vpack.c.b16 %v1706, %v1702
    %v1847 = vpack.c.b16 %v1707, %v1703
    %v1848 = vpack.c.b16 %v1708, %v1704
    %v1849 = vpack.c.b16 %v1709, %v1705
    %v1850 = vpack.c.b16 %v1714, %v1710
    %v1851 = vpack.c.b16 %v1715, %v1711
    %v1852 = vpack.c.b16 %v1716, %v1712
    %v1853 = vpack.c.b16 %v1717, %v1713
    %v1854 = vpack.c.b16 %v1722, %v1718
    %v1855 = vpack.c.b16 %v1723, %v1719
    %v1856 = vpack.c.b16 %v1724, %v1720
    %v1857 = vpack.c.b16 %v1725, %v1721
    %v1858 = vpack.c.b16 %v1730, %v1726
    %v1859 = vpack.c.b16 %v1731, %v1727
    %v1860 = vpack.c.b16 %v1732, %v1728
    %v1861 = vpack.c.b16 %v1733, %v1729
    %1990 = vmatprep.subr.bf16.mxu0 %v1735
    %1991 = vmatpush1.bf16.msra.mxu0 %v1734
    %1992 = vmatprep.subr.bf16.mxu0 %v1739
    %1993 = vmatpush1.bf16.msra.mxu0 %v1738
    %1994 = vmatprep.subr.bf16.mxu0 %v1743
    %1995 = vmatpush1.bf16.msra.mxu0 %v1742
    %1996 = vmatprep.subr.bf16.mxu0 %v1747
    %1997 = vmatpush1.bf16.msra.mxu0 %v1746
    %1998 = vmatprep.subr.bf16.mxu0 %v1751
    %1999 = vmatpush1.bf16.msra.mxu0 %v1750
    %2000 = vmatprep.subr.bf16.mxu0 %v1755
    %2001 = vmatpush1.bf16.msra.mxu0 %v1754
    %2002 = vmatprep.subr.bf16.mxu0 %v1759
    %2003 = vmatpush1.bf16.msra.mxu0 %v1758
    %2004 = vmatprep.subr.bf16.mxu0 %v1763
    %2005 = vmatpush1.bf16.msra.mxu0 %v1762
    %2006 = vmatprep.subr.bf16.mxu0 %v1767
    %2007 = vmatpush1.bf16.msra.mxu0 %v1766
    %2008 = vmatprep.subr.bf16.mxu0 %v1771
    %2009 = vmatpush1.bf16.msra.mxu0 %v1770
    %2010 = vmatprep.subr.bf16.mxu0 %v1775
    %2011 = vmatpush1.bf16.msra.mxu0 %v1774
    %2012 = vmatprep.subr.bf16.mxu0 %v1779
    %2013 = vmatpush1.bf16.msra.mxu0 %v1778
    %2014 = vmatprep.subr.bf16.mxu0 %v1783
    %2015 = vmatpush1.bf16.msra.mxu0 %v1782
    %2016 = vmatprep.subr.bf16.mxu0 %v1787
    %2017 = vmatpush1.bf16.msra.mxu0 %v1786
    %2018 = vmatprep.subr.bf16.mxu0 %v1791
    %2019 = vmatpush1.bf16.msra.mxu0 %v1790
    %2020 = vmatprep.subr.bf16.mxu0 %v1795
    %2021 = vmatpush1.bf16.msra.mxu0 %v1794
    %2022 = vmatprep.mubr.bf16.mxu0 %v1197
    %2023 = vmatmul.mubr.bf16.gmra.mrb[0].mxu0 %v1196
    %v2024 = vpop.f32.mrb[0].mxu0
    %v2025 = vadd.f32 %v1333, %v2024
    %v2026 = vpop.f32.mrb[0].mxu0
    %v2027 = vadd.f32 %v1337, %v2026
    %v2028 = vpop.f32.mrb[0].mxu0
    %v2029 = vpop.f32.mrb[0].mxu0
    %2030 = vdwg.mxu0
    %2031 = vmatprep.subr.bf16.mxu0 %v1799
    %2032 = vmatpush1.bf16.msra.mxu0 %v1798
    %2033 = vmatprep.subr.bf16.mxu0 %v1803
    %2034 = vmatpush1.bf16.msra.mxu0 %v1802
    %2035 = vmatprep.subr.bf16.mxu0 %v1807
    %2036 = vmatpush1.bf16.msra.mxu0 %v1806
    %2037 = vmatprep.subr.bf16.mxu0 %v1811
    %2038 = vmatpush1.bf16.msra.mxu0 %v1810
    %2039 = vmatprep.subr.bf16.mxu0 %v1815
    %2040 = vmatpush1.bf16.msra.mxu0 %v1814
    %2041 = vmatprep.subr.bf16.mxu0 %v1819
    %2042 = vmatpush1.bf16.msra.mxu0 %v1818
    %2043 = vmatprep.subr.bf16.mxu0 %v1823
    %2044 = vmatpush1.bf16.msra.mxu0 %v1822
    %2045 = vmatprep.subr.bf16.mxu0 %v1827
    %2046 = vmatpush1.bf16.msra.mxu0 %v1826
    %2047 = vmatprep.subr.bf16.mxu0 %v1831
    %2048 = vmatpush1.bf16.msra.mxu0 %v1830
    %2049 = vmatprep.subr.bf16.mxu0 %v1835
    %2050 = vmatpush1.bf16.msra.mxu0 %v1834
    %2051 = vmatprep.subr.bf16.mxu0 %v1839
    %2052 = vmatpush1.bf16.msra.mxu0 %v1838
    %2053 = vmatprep.subr.bf16.mxu0 %v1843
    %2054 = vmatpush1.bf16.msra.mxu0 %v1842
    %2055 = vmatprep.subr.bf16.mxu0 %v1847
    %2056 = vmatpush1.bf16.msra.mxu0 %v1846
    %2057 = vmatprep.subr.bf16.mxu0 %v1851
    %2058 = vmatpush1.bf16.msra.mxu0 %v1850
    %2059 = vmatprep.subr.bf16.mxu0 %v1855
    %2060 = vmatpush1.bf16.msra.mxu0 %v1854
    %2061 = vmatprep.subr.bf16.mxu0 %v1859
    %2062 = vmatpush1.bf16.msra.mxu0 %v1858
    %2063 = vmatprep.mubr.bf16.mxu0 %v1199
    %2064 = vmatmul.mubr.bf16.gmra.mrb[0].mxu0 %v1198
    %v2065 = vpop.f32.mrb[0].mxu0
    %v2066 = vadd.f32 %v2025, %v2065
    %v2067 = vpop.f32.mrb[0].mxu0
    %v2068 = vadd.f32 %v2027, %v2067
    %v2069 = vpop.f32.mrb[0].mxu0
    %v2070 = vpop.f32.mrb[0].mxu0
    %2071 = vdwg.mxu0
    %2072 = vmatprep.subr.bf16.mxu0 %v1737
    %2073 = vmatpush1.bf16.msra.mxu0 %v1736
    %2074 = vmatprep.subr.bf16.mxu0 %v1741
    %2075 = vmatpush1.bf16.msra.mxu0 %v1740
    %2076 = vmatprep.subr.bf16.mxu0 %v1745
    %2077 = vmatpush1.bf16.msra.mxu0 %v1744
    %2078 = vmatprep.subr.bf16.mxu0 %v1749
    %2079 = vmatpush1.bf16.msra.mxu0 %v1748
    %2080 = vmatprep.subr.bf16.mxu0 %v1753
    %2081 = vmatpush1.bf16.msra.mxu0 %v1752
    %2082 = vmatprep.subr.bf16.mxu0 %v1757
    %2083 = vmatpush1.bf16.msra.mxu0 %v1756
    %2084 = vmatprep.subr.bf16.mxu0 %v1761
    %2085 = vmatpush1.bf16.msra.mxu0 %v1760
    %2086 = vmatprep.subr.bf16.mxu0 %v1765
    %2087 = vmatpush1.bf16.msra.mxu0 %v1764
    %2088 = vmatprep.subr.bf16.mxu0 %v1769
    %2089 = vmatpush1.bf16.msra.mxu0 %v1768
    %2090 = vmatprep.subr.bf16.mxu0 %v1773
    %2091 = vmatpush1.bf16.msra.mxu0 %v1772
    %2092 = vmatprep.subr.bf16.mxu0 %v1777
    %2093 = vmatpush1.bf16.msra.mxu0 %v1776
    %2094 = vmatprep.subr.bf16.mxu0 %v1781
    %2095 = vmatpush1.bf16.msra.mxu0 %v1780
    %2096 = vmatprep.subr.bf16.mxu0 %v1785
    %2097 = vmatpush1.bf16.msra.mxu0 %v1784
    %2098 = vmatprep.subr.bf16.mxu0 %v1789
    %2099 = vmatpush1.bf16.msra.mxu0 %v1788
    %2100 = vmatprep.subr.bf16.mxu0 %v1793
    %2101 = vmatpush1.bf16.msra.mxu0 %v1792
    %2102 = vmatprep.subr.bf16.mxu0 %v1797
    %2103 = vmatpush1.bf16.msra.mxu0 %v1796
    %2104 = vmatprep.mubr.bf16.mxu0 %v1197
    %2105 = vmatmul.mubr.bf16.gmra.mrb[0].mxu0 %v1196
    %v2106 = vpop.f32.mrb[0].mxu0
    %v2107 = vadd.f32 %v1341, %v2106
    %v2108 = vpop.f32.mrb[0].mxu0
    %v2109 = vadd.f32 %v1345, %v2108
    %v2110 = vpop.f32.mrb[0].mxu0
    %v2111 = vpop.f32.mrb[0].mxu0
    %2112 = vdwg.mxu0
    %2113 = vmatprep.subr.bf16.mxu0 %v1801
    %2114 = vmatpush1.bf16.msra.mxu0 %v1800
    %2115 = vmatprep.subr.bf16.mxu0 %v1805
    %2116 = vmatpush1.bf16.msra.mxu0 %v1804
    %2117 = vmatprep.subr.bf16.mxu0 %v1809
    %2118 = vmatpush1.bf16.msra.mxu0 %v1808
    %2119 = vmatprep.subr.bf16.mxu0 %v1813
    %2120 = vmatpush1.bf16.msra.mxu0 %v1812
    %2121 = vmatprep.subr.bf16.mxu0 %v1817
    %2122 = vmatpush1.bf16.msra.mxu0 %v1816
    %2123 = vmatprep.subr.bf16.mxu0 %v1821
    %2124 = vmatpush1.bf16.msra.mxu0 %v1820
    %2125 = vmatprep.subr.bf16.mxu0 %v1825
    %2126 = vmatpush1.bf16.msra.mxu0 %v1824
    %2127 = vmatprep.subr.bf16.mxu0 %v1829
    %2128 = vmatpush1.bf16.msra.mxu0 %v1828
    %2129 = vmatprep.subr.bf16.mxu0 %v1833
    %2130 = vmatpush1.bf16.msra.mxu0 %v1832
    %2131 = vmatprep.subr.bf16.mxu0 %v1837
    %2132 = vmatpush1.bf16.msra.mxu0 %v1836
    %2133 = vmatprep.subr.bf16.mxu0 %v1841
    %2134 = vmatpush1.bf16.msra.mxu0 %v1840
    %2135 = vmatprep.subr.bf16.mxu0 %v1845
    %2136 = vmatpush1.bf16.msra.mxu0 %v1844
    %2137 = vmatprep.subr.bf16.mxu0 %v1849
    %2138 = vmatpush1.bf16.msra.mxu0 %v1848
    %2139 = vmatprep.subr.bf16.mxu0 %v1853
    %2140 = vmatpush1.bf16.msra.mxu0 %v1852
    %2141 = vmatprep.subr.bf16.mxu0 %v1857
    %2142 = vmatpush1.bf16.msra.mxu0 %v1856
    %2143 = vmatprep.subr.bf16.mxu0 %v1861
    %2144 = vmatpush1.bf16.msra.mxu0 %v1860
    %2145 = vmatprep.mubr.bf16.mxu0 %v1199
    %2146 = vmatmul.mubr.bf16.gmra.mrb[0].mxu0 %v1198
    %v2147 = vpop.f32.mrb[0].mxu0
    %v2148 = vadd.f32 %v2107, %v2147
    %v2149 = vpop.f32.mrb[0].mxu0
    %v2150 = vadd.f32 %v2109, %v2149
    %v2151 = vpop.f32.mrb[0].mxu0
    %v2152 = vpop.f32.mrb[0].mxu0
    %2153 = vdwg.mxu0
    %v2154 = vmul.f32 %v2066, 0.01
    %v2155 = vmul.f32 %v2068, 0.01
    %v2156 = vmul.f32 %v2148, 0.01
    %v2157 = vmul.f32 %v2150, 0.01
    %v2158 = vmax.f32 %v2066, %v2154
    %v2159 = vmax.f32 %v2068, %v2155
    %v2160 = vmax.f32 %v2148, %v2156
    %v2161 = vmax.f32 %v2150, %v2157
    %v2162 = vpack.c.bf16 %v2158, %v2158
    %v2163 = vpack.c.bf16 %v2159, %v2159
    %v2164 = vpack.c.bf16 %v2160, %v2160
    %v2165 = vpack.c.bf16 %v2161, %v2161
    %v2166 = vld [vmem:[#allocation8] sm:$0xf]
    %v2167 = vld [vmem:[#allocation8 + $0x4] sm:$0xf]
    %v2168 = vld [vmem:[#allocation8 + $0x8] sm:$0xf]
    %v2169 = vld [vmem:[#allocation8 + $0xc] sm:$0xf]
    %v2170 = vld [vmem:[#allocation8 + $0x10] sm:$0xf]
    %v2171 = vld [vmem:[#allocation8 + $0x14] sm:$0xf]
    %v2172 = vld [vmem:[#allocation8 + $0x18] sm:$0xf]
    %v2173 = vld [vmem:[#allocation8 + $0x1c] sm:$0xf]
    %v2174 = vld [vmem:[#allocation8 + $0x20] sm:$0xf]
    %v2175 = vld [vmem:[#allocation8 + $0x24] sm:$0xf]
    %v2176 = vld [vmem:[#allocation8 + $0x28] sm:$0xf]
    %v2177 = vld [vmem:[#allocation8 + $0x2c] sm:$0xf]
    %v2178 = vld [vmem:[#allocation8 + $0x30] sm:$0xf]
    %v2179 = vld [vmem:[#allocation8 + $0x34] sm:$0xf]
    %v2180 = vld [vmem:[#allocation8 + $0x38] sm:$0xf]
    %v2181 = vld [vmem:[#allocation8 + $0x3c] sm:$0xf]
    %v2182 = vld [vmem:[#allocation8 + $0x40] sm:$0xf]
    %v2183 = vld [vmem:[#allocation8 + $0x44] sm:$0xf]
    %v2184 = vld [vmem:[#allocation8 + $0x48] sm:$0xf]
    %v2185 = vld [vmem:[#allocation8 + $0x4c] sm:$0xf]
    %v2186 = vld [vmem:[#allocation8 + $0x50] sm:$0xf]
    %v2187 = vld [vmem:[#allocation8 + $0x54] sm:$0xf]
    %v2188 = vld [vmem:[#allocation8 + $0x58] sm:$0xf]
    %v2189 = vld [vmem:[#allocation8 + $0x5c] sm:$0xf]
    %v2190 = vld [vmem:[#allocation8 + $0x60] sm:$0xf]
    %v2191 = vld [vmem:[#allocation8 + $0x64] sm:$0xf]
    %v2192 = vld [vmem:[#allocation8 + $0x68] sm:$0xf]
    %v2193 = vld [vmem:[#allocation8 + $0x6c] sm:$0xf]
    %v2194 = vld [vmem:[#allocation8 + $0x70] sm:$0xf]
    %v2195 = vld [vmem:[#allocation8 + $0x74] sm:$0xf]
    %v2196 = vld [vmem:[#allocation8 + $0x78] sm:$0xf]
    %v2197 = vld [vmem:[#allocation8 + $0x7c] sm:$0xf]
    %v2198 = vld [vmem:[#allocation8 + $0x80] sm:$0xf]
    %v2199 = vld [vmem:[#allocation8 + $0x84] sm:$0xf]
    %v2200 = vld [vmem:[#allocation8 + $0x88] sm:$0xf]
    %v2201 = vld [vmem:[#allocation8 + $0x8c] sm:$0xf]
    %v2202 = vld [vmem:[#allocation8 + $0x90] sm:$0xf]
    %v2203 = vld [vmem:[#allocation8 + $0x94] sm:$0xf]
    %v2204 = vld [vmem:[#allocation8 + $0x98] sm:$0xf]
    %v2205 = vld [vmem:[#allocation8 + $0x9c] sm:$0xf]
    %v2206 = vld [vmem:[#allocation8 + $0xa0] sm:$0xf]
    %v2207 = vld [vmem:[#allocation8 + $0xa4] sm:$0xf]
    %v2208 = vld [vmem:[#allocation8 + $0xa8] sm:$0xf]
    %v2209 = vld [vmem:[#allocation8 + $0xac] sm:$0xf]
    %v2210 = vld [vmem:[#allocation8 + $0xb0] sm:$0xf]
    %v2211 = vld [vmem:[#allocation8 + $0xb4] sm:$0xf]
    %v2212 = vld [vmem:[#allocation8 + $0xb8] sm:$0xf]
    %v2213 = vld [vmem:[#allocation8 + $0xbc] sm:$0xf]
    %v2214 = vld [vmem:[#allocation8 + $0xc0] sm:$0xf]
    %v2215 = vld [vmem:[#allocation8 + $0xc4] sm:$0xf]
    %v2216 = vld [vmem:[#allocation8 + $0xc8] sm:$0xf]
    %v2217 = vld [vmem:[#allocation8 + $0xcc] sm:$0xf]
    %v2218 = vld [vmem:[#allocation8 + $0xd0] sm:$0xf]
    %v2219 = vld [vmem:[#allocation8 + $0xd4] sm:$0xf]
    %v2220 = vld [vmem:[#allocation8 + $0xd8] sm:$0xf]
    %v2221 = vld [vmem:[#allocation8 + $0xdc] sm:$0xf]
    %v2222 = vld [vmem:[#allocation8 + $0xe0] sm:$0xf]
    %v2223 = vld [vmem:[#allocation8 + $0xe4] sm:$0xf]
    %v2224 = vld [vmem:[#allocation8 + $0xe8] sm:$0xf]
    %v2225 = vld [vmem:[#allocation8 + $0xec] sm:$0xf]
    %v2226 = vld [vmem:[#allocation8 + $0xf0] sm:$0xf]
    %v2227 = vld [vmem:[#allocation8 + $0xf4] sm:$0xf]
    %v2228 = vld [vmem:[#allocation8 + $0xf8] sm:$0xf]
    %v2229 = vld [vmem:[#allocation8 + $0xfc] sm:$0xf]
    %v2230 = vld [vmem:[%s8] sm:$0x1]
    %v2232 = vlaneseq
    %v2233 = vshrl.u32 %v2232, 7
    %v2234 = vsub.s32 0, %v2233
    %v2235 = vrot.slane %v2230, %v2234
    %v2301 = vunpack.c.l.b16 %v2166
    %v2302 = vunpack.c.l.b16 %v2167
    %v2303 = vunpack.c.l.b16 %v2168
    %v2304 = vunpack.c.l.b16 %v2169
    %v2305 = vunpack.c.l.b16 %v2170
    %v2306 = vunpack.c.l.b16 %v2171
    %v2307 = vunpack.c.l.b16 %v2172
    %v2308 = vunpack.c.l.b16 %v2173
    %v2309 = vunpack.c.l.b16 %v2174
    %v2310 = vunpack.c.l.b16 %v2175
    %v2311 = vunpack.c.l.b16 %v2176
    %v2312 = vunpack.c.l.b16 %v2177
    %v2313 = vunpack.c.l.b16 %v2178
    %v2314 = vunpack.c.l.b16 %v2179
    %v2315 = vunpack.c.l.b16 %v2180
    %v2316 = vunpack.c.l.b16 %v2181
    %v2317 = vunpack.c.l.b16 %v2182
    %v2318 = vunpack.c.l.b16 %v2183
    %v2319 = vunpack.c.l.b16 %v2184
    %v2320 = vunpack.c.l.b16 %v2185
    %v2321 = vunpack.c.l.b16 %v2186
    %v2322 = vunpack.c.l.b16 %v2187
    %v2323 = vunpack.c.l.b16 %v2188
    %v2324 = vunpack.c.l.b16 %v2189
    %v2325 = vunpack.c.l.b16 %v2190
    %v2326 = vunpack.c.l.b16 %v2191
    %v2327 = vunpack.c.l.b16 %v2192
    %v2328 = vunpack.c.l.b16 %v2193
    %v2329 = vunpack.c.l.b16 %v2194
    %v2330 = vunpack.c.l.b16 %v2195
    %v2331 = vunpack.c.l.b16 %v2196
    %v2332 = vunpack.c.l.b16 %v2197
    %v2333 = vunpack.c.l.b16 %v2198
    %v2334 = vunpack.c.l.b16 %v2199
    %v2335 = vunpack.c.l.b16 %v2200
    %v2336 = vunpack.c.l.b16 %v2201
    %v2337 = vunpack.c.l.b16 %v2202
    %v2338 = vunpack.c.l.b16 %v2203
    %v2339 = vunpack.c.l.b16 %v2204
    %v2340 = vunpack.c.l.b16 %v2205
    %v2341 = vunpack.c.l.b16 %v2206
    %v2342 = vunpack.c.l.b16 %v2207
    %v2343 = vunpack.c.l.b16 %v2208
    %v2344 = vunpack.c.l.b16 %v2209
    %v2345 = vunpack.c.l.b16 %v2210
    %v2346 = vunpack.c.l.b16 %v2211
    %v2347 = vunpack.c.l.b16 %v2212
    %v2348 = vunpack.c.l.b16 %v2213
    %v2349 = vunpack.c.l.b16 %v2214
    %v2350 = vunpack.c.l.b16 %v2215
    %v2351 = vunpack.c.l.b16 %v2216
    %v2352 = vunpack.c.l.b16 %v2217
    %v2353 = vunpack.c.l.b16 %v2218
    %v2354 = vunpack.c.l.b16 %v2219
    %v2355 = vunpack.c.l.b16 %v2220
    %v2356 = vunpack.c.l.b16 %v2221
    %v2357 = vunpack.c.l.b16 %v2222
    %v2358 = vunpack.c.l.b16 %v2223
    %v2359 = vunpack.c.l.b16 %v2224
    %v2360 = vunpack.c.l.b16 %v2225
    %v2361 = vunpack.c.l.b16 %v2226
    %v2362 = vunpack.c.l.b16 %v2227
    %v2363 = vunpack.c.l.b16 %v2228
    %v2364 = vunpack.c.l.b16 %v2229
    %v2365 = vpack.c.b16 %v2302, %v2301
    %v2366 = vpack.c.b16 %v2304, %v2303
    %v2367 = vpack.c.b16 %v2306, %v2305
    %v2368 = vpack.c.b16 %v2308, %v2307
    %v2369 = vpack.c.b16 %v2310, %v2309
    %v2370 = vpack.c.b16 %v2312, %v2311
    %v2371 = vpack.c.b16 %v2314, %v2313
    %v2372 = vpack.c.b16 %v2316, %v2315
    %v2373 = vpack.c.b16 %v2318, %v2317
    %v2374 = vpack.c.b16 %v2320, %v2319
    %v2375 = vpack.c.b16 %v2322, %v2321
    %v2376 = vpack.c.b16 %v2324, %v2323
    %v2377 = vpack.c.b16 %v2326, %v2325
    %v2378 = vpack.c.b16 %v2328, %v2327
    %v2379 = vpack.c.b16 %v2330, %v2329
    %v2380 = vpack.c.b16 %v2332, %v2331
    %v2381 = vpack.c.b16 %v2334, %v2333
    %v2382 = vpack.c.b16 %v2336, %v2335
    %v2383 = vpack.c.b16 %v2338, %v2337
    %v2384 = vpack.c.b16 %v2340, %v2339
    %v2385 = vpack.c.b16 %v2342, %v2341
    %v2386 = vpack.c.b16 %v2344, %v2343
    %v2387 = vpack.c.b16 %v2346, %v2345
    %v2388 = vpack.c.b16 %v2348, %v2347
    %v2389 = vpack.c.b16 %v2350, %v2349
    %v2390 = vpack.c.b16 %v2352, %v2351
    %v2391 = vpack.c.b16 %v2354, %v2353
    %v2392 = vpack.c.b16 %v2356, %v2355
    %v2393 = vpack.c.b16 %v2358, %v2357
    %v2394 = vpack.c.b16 %v2360, %v2359
    %v2395 = vpack.c.b16 %v2362, %v2361
    %v2396 = vpack.c.b16 %v2364, %v2363
    %2429 = vmatprep.subr.bf16.mxu0 0
    %2430 = vmatpush1.bf16.msra.mxu0 %v2365
    %2431 = vmatprep.subr.bf16.mxu0 0
    %2432 = vmatpush1.bf16.msra.mxu0 %v2366
    %2433 = vmatprep.subr.bf16.mxu0 0
    %2434 = vmatpush1.bf16.msra.mxu0 %v2367
    %2435 = vmatprep.subr.bf16.mxu0 0
    %2436 = vmatpush1.bf16.msra.mxu0 %v2368
    %2437 = vmatprep.subr.bf16.mxu0 0
    %2438 = vmatpush1.bf16.msra.mxu0 %v2369
    %2439 = vmatprep.subr.bf16.mxu0 0
    %2440 = vmatpush1.bf16.msra.mxu0 %v2370
    %2441 = vmatprep.subr.bf16.mxu0 0
    %2442 = vmatpush1.bf16.msra.mxu0 %v2371
    %2443 = vmatprep.subr.bf16.mxu0 0
    %2444 = vmatpush1.bf16.msra.mxu0 %v2372
    %2445 = vmatprep.subr.bf16.mxu0 0
    %2446 = vmatpush1.bf16.msra.mxu0 %v2373
    %2447 = vmatprep.subr.bf16.mxu0 0
    %2448 = vmatpush1.bf16.msra.mxu0 %v2374
    %2449 = vmatprep.subr.bf16.mxu0 0
    %2450 = vmatpush1.bf16.msra.mxu0 %v2375
    %2451 = vmatprep.subr.bf16.mxu0 0
    %2452 = vmatpush1.bf16.msra.mxu0 %v2376
    %2453 = vmatprep.subr.bf16.mxu0 0
    %2454 = vmatpush1.bf16.msra.mxu0 %v2377
    %2455 = vmatprep.subr.bf16.mxu0 0
    %2456 = vmatpush1.bf16.msra.mxu0 %v2378
    %2457 = vmatprep.subr.bf16.mxu0 0
    %2458 = vmatpush1.bf16.msra.mxu0 %v2379
    %2459 = vmatprep.subr.bf16.mxu0 0
    %2460 = vmatpush1.bf16.msra.mxu0 %v2380
    %2461 = vmatprep.mubr.bf16.mxu0 %v2163
    %2462 = vmatmul.mubr.bf16.gmra.mrb[0].mxu0 %v2162
    %v2463 = vpop.f32.mrb[0].mxu0
    %v2464 = vadd.f32 %v2235, %v2463
    %v2465 = vpop.f32.mrb[0].mxu0
    %v2466 = vpop.f32.mrb[0].mxu0
    %v2467 = vpop.f32.mrb[0].mxu0
    %2468 = vdwg.mxu0
    %2469 = vmatprep.subr.bf16.mxu0 0
    %2470 = vmatpush1.bf16.msra.mxu0 %v2381
    %2471 = vmatprep.subr.bf16.mxu0 0
    %2472 = vmatpush1.bf16.msra.mxu0 %v2382
    %2473 = vmatprep.subr.bf16.mxu0 0
    %2474 = vmatpush1.bf16.msra.mxu0 %v2383
    %2475 = vmatprep.subr.bf16.mxu0 0
    %2476 = vmatpush1.bf16.msra.mxu0 %v2384
    %2477 = vmatprep.subr.bf16.mxu0 0
    %2478 = vmatpush1.bf16.msra.mxu0 %v2385
    %2479 = vmatprep.subr.bf16.mxu0 0
    %2480 = vmatpush1.bf16.msra.mxu0 %v2386
    %2481 = vmatprep.subr.bf16.mxu0 0
    %2482 = vmatpush1.bf16.msra.mxu0 %v2387
    %2483 = vmatprep.subr.bf16.mxu0 0
    %2484 = vmatpush1.bf16.msra.mxu0 %v2388
    %2485 = vmatprep.subr.bf16.mxu0 0
    %2486 = vmatpush1.bf16.msra.mxu0 %v2389
    %2487 = vmatprep.subr.bf16.mxu0 0
    %2488 = vmatpush1.bf16.msra.mxu0 %v2390
    %2489 = vmatprep.subr.bf16.mxu0 0
    %2490 = vmatpush1.bf16.msra.mxu0 %v2391
    %2491 = vmatprep.subr.bf16.mxu0 0
    %2492 = vmatpush1.bf16.msra.mxu0 %v2392
    %2493 = vmatprep.subr.bf16.mxu0 0
    %2494 = vmatpush1.bf16.msra.mxu0 %v2393
    %2495 = vmatprep.subr.bf16.mxu0 0
    %2496 = vmatpush1.bf16.msra.mxu0 %v2394
    %2497 = vmatprep.subr.bf16.mxu0 0
    %2498 = vmatpush1.bf16.msra.mxu0 %v2395
    %2499 = vmatprep.subr.bf16.mxu0 0
    %2500 = vmatpush1.bf16.msra.mxu0 %v2396
    %2501 = vmatprep.mubr.bf16.mxu0 %v2165
    %2502 = vmatmul.mubr.bf16.gmra.mrb[0].mxu0 %v2164
    %v2503 = vpop.f32.mrb[0].mxu0
    %v2504 = vadd.f32 %v2464, %v2503
    %v2505 = vpop.f32.mrb[0].mxu0
    %v2506 = vpop.f32.mrb[0].mxu0
    %v2507 = vpop.f32.mrb[0].mxu0
    %2508 = vdwg.mxu0
    %2509 = vst [vmem:[#allocation10] sm:$0xff] %v2504
    // Predicated region
    $region54: #{dqn_forward.1} parent=1 // pred_check
      _
    $region55: #{dqn_forward.1} parent=1 // pred_check_branch
      %2511 = sbr.rel (0) target = $region57
    $region56: #{dqn_forward.1} parent=1 // pred_region
      %s2513 = ssub.s32 128, 128
      %2514 = vsyncadd [#allocation4], %s2513
      %s2516 = sshll.u32 [#allocation10], 4
      %s2517 = int_to_ptr.vmem [resolvable:$true] %s2516
      %2519 = dma.vmem_to_hbm [thread:$0]  %s2517, 128, %s9, [#allocation4]
    $region57: #{dqn_forward.1} parent=1 // pred_fallthru
      _
    // Predicated region
    $region58: #{dqn_forward.1} parent=1 // pred_check
      _
    $region59: #{dqn_forward.1} parent=1 // pred_check_branch
      %2521 = sbr.rel (0) target = $region61
    $region60: #{dqn_forward.1} parent=1 // pred_region
      %2522 = dma.done [#allocation4], 128
    $region61: #{dqn_forward.1} parent=1 // pred_fallthru
      _
    %2523 = vsyncpa [#allocation3], 1
    %2524 = vsyncpa [#allocation6], 1
    %2525 = vsyncpa [#allocation9], 1
    %2526 = vsyncpa [#allocation4], 1

</llo_original>
